<compile_context>
chip_gen: v5e
topology: v5e:2x2
jax: 0.10.0
libtpu: 0.0.40
codegen_flags: <defaults>
</compile_context>

<pallas_src>
import jax
import jax.numpy as jnp
from jax.experimental import pallas as pl
from jax.experimental.pallas import tpu as pltpu

MXU_DTYPE = jnp.bfloat16  # matmul operand dtype (f32 accumulate); jnp.float32 = exact


def _hardswish(x):
    return x * jnp.clip(x + 3.0, 0.0, 6.0) * (1.0 / 6.0)


def _fold_bn(bn, eps=1e-5):
    """Eval-mode BatchNorm -> per-channel (scale, shift)."""
    scale = bn["gamma"] * jax.lax.rsqrt(bn["var"] + eps)
    shift = bn["beta"] - bn["mean"] * scale
    return scale, shift


def res_block_forward(x_nchw, params, mxu_dtype=MXU_DTYPE):
    """x_nchw: (B, Cin, H, W) float32 (PyTorch layout) -> (B, Cout, H, W)."""
    B, Cin, H, W = x_nchw.shape

    # ---- fold BatchNorm (eval mode) into the adjacent conv weights (host, tiny) ----
    s1, b1 = _fold_bn(params["conv1_bn"])
    w1 = (params["conv1_w"] * s1[:, None]).T.astype(mxu_dtype)        # (Cin, Chid)
    sn, nshift = _fold_bn(params["norm_bn"])
    # depthwise weight (Chid, 3, 3) -> (9, Chid) with the BN scale folded in
    dw = (jnp.transpose(params["dw_w"], (1, 2, 0)) * sn).reshape(9, -1).astype(jnp.float32)
    s2, b2 = _fold_bn(params["conv2_bn"])
    w2 = (params["conv2_w"] * s2[:, None]).T.astype(mxu_dtype)        # (Chid, Cout)

    Chid = w1.shape[1]
    Cout = w2.shape[1]
    assert Cout == Cin, "ResBlock residual requires out_features == in_features"
    Hp, Wp = H + 2, W + 2

    b1_2 = b1.reshape(1, Chid).astype(jnp.float32)
    nb_2 = nshift.reshape(1, Chid).astype(jnp.float32)
    b2_2 = b2.reshape(1, Cout).astype(jnp.float32)

    # NHWC: channels land on TPU lanes (lane-dense for C >= 128)
    x_nhwc = jnp.transpose(x_nchw, (0, 2, 3, 1))

    def kernel(x_ref, w1_ref, b1_ref, dw_ref, nb_ref, w2_ref, b2_ref, o_ref, pad_ref):
        xf = x_ref[0].astype(jnp.float32)                              # (H, W, Cin)

        # ---- conv1 (1x1 conv + folded BN) as a GEMM, then hardswish ----
        a = xf.reshape(H * W, Cin).astype(w1_ref.dtype)
        h = jnp.dot(a, w1_ref[...], preferred_element_type=jnp.float32)
        h = _hardswish(h + b1_ref[...])                                # (H*W, Chid) f32
        hid = h.reshape(H, W, Chid)

        # ---- 3x3 depthwise conv, zero 'same' padding built in a VMEM scratch ----
        pad_ref[...] = jnp.zeros((Hp, Wp, Chid), jnp.float32)
        pad_ref[1:H + 1, 1:W + 1, :] = hid
        hp = pad_ref[...]                                              # (Hp, Wp, Chid)
        dwv = dw_ref[...]                                              # (9, Chid)
        acc = hp[1:1 + H, 1:1 + W, :] * dwv[4]                         # centre tap
        for ki in range(3):
            for kj in range(3):
                if ki == 1 and kj == 1:
                    continue
                acc = acc + hp[ki:ki + H, kj:kj + W, :] * dwv[ki * 3 + kj]
        acc = _hardswish(acc + nb_ref[...])                            # BN shift + act

        # ---- conv2 (1x1 conv + folded BN) as a GEMM, then residual add ----
        a2 = acc.reshape(H * W, Chid).astype(w2_ref.dtype)
        y = jnp.dot(a2, w2_ref[...], preferred_element_type=jnp.float32)
        y = (y + b2_ref[...]).reshape(H, W, Cout)
        o_ref[0] = (xf + y).astype(o_ref.dtype)

    out_nhwc = pl.pallas_call(
        kernel,
        out_shape=jax.ShapeDtypeStruct((B, H, W, Cout), x_nchw.dtype),
        grid=(B,),
        in_specs=[
            pl.BlockSpec((1, H, W, Cin), lambda b: (b, 0, 0, 0)),
            pl.BlockSpec((Cin, Chid), lambda b: (0, 0)),
            pl.BlockSpec((1, Chid), lambda b: (0, 0)),
            pl.BlockSpec((9, Chid), lambda b: (0, 0)),
            pl.BlockSpec((1, Chid), lambda b: (0, 0)),
            pl.BlockSpec((Chid, Cout), lambda b: (0, 0)),
            pl.BlockSpec((1, Cout), lambda b: (0, 0)),
        ],
        out_specs=pl.BlockSpec((1, H, W, Cout), lambda b: (b, 0, 0, 0)),
        scratch_shapes=[pltpu.VMEM((Hp, Wp, Chid), jnp.float32)],
        compiler_params=pltpu.CompilerParams(
            dimension_semantics=("parallel",),
            vmem_limit_bytes=32 * 1024 * 1024,
        ),
    )(x_nhwc, w1, b1_2, dw, nb_2, w2, b2_2)

    return jnp.transpose(out_nhwc, (0, 3, 1, 2))


# ----------------------------------------------------------------------------
# Deterministic parameter init (shapes follow ResBlock.__init__ / _init_weights)
# ----------------------------------------------------------------------------
def init_params(key, in_features, hidden_features=None, out_features=None):
    hidden_features = hidden_features or in_features
    out_features = out_features or in_features
    ks = jax.random.split(key, 6)

    def conv1x1_w(k, out_c, in_c):
        std = (2.0 / out_c) ** 0.5                      # fan_out = 1*1*out_c
        return std * jax.random.normal(k, (out_c, in_c), jnp.float32)

    def dw3x3_w(k, c):
        std = (2.0 / 9.0) ** 0.5                        # fan_out = 3*3*c // c
        return std * jax.random.normal(k, (c, 3, 3), jnp.float32)

    def bn_stats(k, c):
        k1, k2, k3, k4 = jax.random.split(k, 4)
        return dict(gamma=1.0 + 0.1 * jax.random.normal(k1, (c,), jnp.float32),
                    beta=0.1 * jax.random.normal(k2, (c,), jnp.float32),
                    mean=0.1 * jax.random.normal(k3, (c,), jnp.float32),
                    var=1.0 + 0.1 * jax.random.uniform(k4, (c,), jnp.float32))

    return dict(
        conv1_w=conv1x1_w(ks[0], hidden_features, in_features),
        conv1_bn=bn_stats(ks[1], hidden_features),
        dw_w=dw3x3_w(ks[2], hidden_features),
        norm_bn=bn_stats(ks[3], hidden_features),
        conv2_w=conv1x1_w(ks[4], out_features, hidden_features),
        conv2_bn=bn_stats(ks[5], out_features),
    )


# ----------------------------------------------------------------------------
if __name__ == "__main__":
    B, C, H, W = 2, 128, 16, 16          # C=128 -> lane-dense channel axis
    key = jax.random.PRNGKey(0)
    k_x, k_p = jax.random.split(key)
    x = jax.random.normal(k_x, (B, C, H, W), jnp.float32)   # NCHW (PyTorch layout)
    params = init_params(k_p, C)

    fwd = jax.jit(res_block_forward)
    out = fwd(x, params)
    jax.block_until_ready(out)

    assert out.shape == (B, C, H, W)
    assert bool(jnp.all(jnp.isfinite(out)))
    print("KERNEL_OK")
</pallas_src>

<mosaic_0001>
module attributes {stable_mosaic.version = 11 : i64} {
  func.func @kernel(%arg0: i32, %arg1: memref<1x16x16x128xf32, #tpu.memory_space<vmem>>, %arg2: memref<128x128xbf16, #tpu.memory_space<vmem>>, %arg3: memref<1x128xf32, #tpu.memory_space<vmem>>, %arg4: memref<9x128xf32, #tpu.memory_space<vmem>>, %arg5: memref<1x128xf32, #tpu.memory_space<vmem>>, %arg6: memref<128x128xbf16, #tpu.memory_space<vmem>>, %arg7: memref<1x128xf32, #tpu.memory_space<vmem>>, %arg8: memref<1x16x16x128xf32, #tpu.memory_space<vmem>>, %arg9: memref<18x18x128xf32, #tpu.memory_space<vmem>>) attributes {dimension_semantics = [#tpu.dimension_semantics<parallel>], iteration_bounds = array<i64: 2>, scalar_prefetch = 0 : i64, scratch_operands = 1 : i64, tpu.core_type = #tpu.core_type<tc>, window_params = [{transform_indices = @transform_0, window_bounds = array<i64: 1, 16, 16, 128>}, {pipeline_mode = #tpu.pipeline_mode<synchronous>, transform_indices = @transform_1, window_bounds = array<i64: 128, 128>}, {pipeline_mode = #tpu.pipeline_mode<synchronous>, transform_indices = @transform_2, window_bounds = array<i64: 1, 128>}, {pipeline_mode = #tpu.pipeline_mode<synchronous>, transform_indices = @transform_3, window_bounds = array<i64: 9, 128>}, {pipeline_mode = #tpu.pipeline_mode<synchronous>, transform_indices = @transform_4, window_bounds = array<i64: 1, 128>}, {pipeline_mode = #tpu.pipeline_mode<synchronous>, transform_indices = @transform_5, window_bounds = array<i64: 128, 128>}, {pipeline_mode = #tpu.pipeline_mode<synchronous>, transform_indices = @transform_6, window_bounds = array<i64: 1, 128>}, {transform_indices = @transform_7, window_bounds = array<i64: 1, 16, 16, 128>}]} {
    %c0 = arith.constant 0 : index
    %c0_0 = arith.constant 0 : index
    %c0_1 = arith.constant 0 : index
    %c0_2 = arith.constant 0 : index
    %0 = vector.load %arg1[%c0, %c0_0, %c0_1, %c0_2] : memref<1x16x16x128xf32, #tpu.memory_space<vmem>>, vector<1x16x16x128xf32>
    %1 = vector.shape_cast %0 : vector<1x16x16x128xf32> to vector<16x16x128xf32>
    %2 = vector.shape_cast %1 : vector<16x16x128xf32> to vector<256x128xf32>
    %3 = arith.truncf %2 : vector<256x128xf32> to vector<256x128xbf16>
    %c0_3 = arith.constant 0 : index
    %c0_4 = arith.constant 0 : index
    %4 = vector.load %arg2[%c0_3, %c0_4] : memref<128x128xbf16, #tpu.memory_space<vmem>>, vector<128x128xbf16>
    %cst = arith.constant dense<0.000000e+00> : vector<256x128xf32>
    %5 = tpu.matmul %3, %4, %cst {dimension_numbers = #tpu.dot_dimension_numbers<[1], [0], [0], [1], [0, 0, 1, 1], [], []>} : vector<256x128xbf16>, vector<128x128xbf16>, vector<256x128xf32> -> vector<256x128xf32>
    %c0_5 = arith.constant 0 : index
    %c0_6 = arith.constant 0 : index
    %6 = vector.load %arg3[%c0_5, %c0_6] : memref<1x128xf32, #tpu.memory_space<vmem>>, vector<1x128xf32>
    %7 = vector.broadcast %6 : vector<1x128xf32> to vector<256x128xf32>
    %8 = arith.addf %5, %7 : vector<256x128xf32>
    %cst_7 = arith.constant 3.000000e+00 : f32
    %9 = vector.broadcast %cst_7 : f32 to vector<256x128xf32>
    %10 = arith.addf %8, %9 : vector<256x128xf32>
    %cst_8 = arith.constant 0.000000e+00 : f32
    %cst_9 = arith.constant 6.000000e+00 : f32
    %11 = vector.broadcast %cst_8 : f32 to vector<256x128xf32>
    %12 = arith.maximumf %11, %10 : vector<256x128xf32>
    %13 = vector.broadcast %cst_9 : f32 to vector<256x128xf32>
    %14 = arith.minimumf %13, %12 : vector<256x128xf32>
    %15 = arith.mulf %8, %14 : vector<256x128xf32>
    %cst_10 = arith.constant 0.166666672 : f32
    %16 = vector.broadcast %cst_10 : f32 to vector<256x128xf32>
    %17 = arith.mulf %15, %16 : vector<256x128xf32>
    %18 = vector.shape_cast %17 : vector<256x128xf32> to vector<16x16x128xf32>
    %cst_11 = arith.constant 0.000000e+00 : f32
    %19 = vector.broadcast %cst_11 : f32 to vector<18x18x128xf32>
    %c0_12 = arith.constant 0 : index
    %c0_13 = arith.constant 0 : index
    %c0_14 = arith.constant 0 : index
    %20 = vector.load %arg9[%c0_12, %c0_13, %c0_14] : memref<18x18x128xf32, #tpu.memory_space<vmem>>, vector<18x18x128xf32>
    tpu.vector_store %arg9[%c0_12, %c0_13, %c0_14], %19 {strides = array<i32>} : memref<18x18x128xf32, #tpu.memory_space<vmem>>, vector<18x18x128xf32>,
    %c1 = arith.constant 1 : index
    %c1_15 = arith.constant 1 : index
    %c0_16 = arith.constant 0 : index
    %21 = vector.load %arg9[%c1, %c1_15, %c0_16] : memref<18x18x128xf32, #tpu.memory_space<vmem>>, vector<16x16x128xf32>
    tpu.vector_store %arg9[%c1, %c1_15, %c0_16], %18 {strides = array<i32>} : memref<18x18x128xf32, #tpu.memory_space<vmem>>, vector<16x16x128xf32>,
    %c0_17 = arith.constant 0 : index
    %c0_18 = arith.constant 0 : index
    %c0_19 = arith.constant 0 : index
    %22 = vector.load %arg9[%c0_17, %c0_18, %c0_19] : memref<18x18x128xf32, #tpu.memory_space<vmem>>, vector<18x18x128xf32>
    %c0_20 = arith.constant 0 : index
    %c0_21 = arith.constant 0 : index
    %23 = vector.load %arg4[%c0_20, %c0_21] : memref<9x128xf32, #tpu.memory_space<vmem>>, vector<9x128xf32>
    %24 = vector.extract_strided_slice %22 {offsets = [1, 1, 0], sizes = [16, 16, 128], strides = [1, 1, 1]} : vector<18x18x128xf32> to vector<16x16x128xf32>
    %25 = vector.extract_strided_slice %23 {offsets = [4, 0], sizes = [1, 128], strides = [1, 1]} : vector<9x128xf32> to vector<1x128xf32>
    %26 = vector.shape_cast %25 : vector<1x128xf32> to vector<128xf32>
    %27 = vector.shape_cast %26 : vector<128xf32> to vector<1x1x128xf32>
    %28 = vector.broadcast %27 : vector<1x1x128xf32> to vector<16x16x128xf32>
    %29 = arith.mulf %24, %28 : vector<16x16x128xf32>
    %30 = vector.extract_strided_slice %22 {offsets = [0, 0, 0], sizes = [16, 16, 128], strides = [1, 1, 1]} : vector<18x18x128xf32> to vector<16x16x128xf32>
    %31 = vector.extract_strided_slice %23 {offsets = [0, 0], sizes = [1, 128], strides = [1, 1]} : vector<9x128xf32> to vector<1x128xf32>
    %32 = vector.shape_cast %31 : vector<1x128xf32> to vector<128xf32>
    %33 = vector.shape_cast %32 : vector<128xf32> to vector<1x1x128xf32>
    %34 = vector.broadcast %33 : vector<1x1x128xf32> to vector<16x16x128xf32>
    %35 = arith.mulf %30, %34 : vector<16x16x128xf32>
    %36 = arith.addf %29, %35 : vector<16x16x128xf32>
    %37 = vector.extract_strided_slice %22 {offsets = [0, 1, 0], sizes = [16, 16, 128], strides = [1, 1, 1]} : vector<18x18x128xf32> to vector<16x16x128xf32>
    %38 = vector.extract_strided_slice %23 {offsets = [1, 0], sizes = [1, 128], strides = [1, 1]} : vector<9x128xf32> to vector<1x128xf32>
    %39 = vector.shape_cast %38 : vector<1x128xf32> to vector<128xf32>
    %40 = vector.shape_cast %39 : vector<128xf32> to vector<1x1x128xf32>
    %41 = vector.broadcast %40 : vector<1x1x128xf32> to vector<16x16x128xf32>
    %42 = arith.mulf %37, %41 : vector<16x16x128xf32>
    %43 = arith.addf %36, %42 : vector<16x16x128xf32>
    %44 = vector.extract_strided_slice %22 {offsets = [0, 2, 0], sizes = [16, 16, 128], strides = [1, 1, 1]} : vector<18x18x128xf32> to vector<16x16x128xf32>
    %45 = vector.extract_strided_slice %23 {offsets = [2, 0], sizes = [1, 128], strides = [1, 1]} : vector<9x128xf32> to vector<1x128xf32>
    %46 = vector.shape_cast %45 : vector<1x128xf32> to vector<128xf32>
    %47 = vector.shape_cast %46 : vector<128xf32> to vector<1x1x128xf32>
    %48 = vector.broadcast %47 : vector<1x1x128xf32> to vector<16x16x128xf32>
    %49 = arith.mulf %44, %48 : vector<16x16x128xf32>
    %50 = arith.addf %43, %49 : vector<16x16x128xf32>
    %51 = vector.extract_strided_slice %22 {offsets = [1, 0, 0], sizes = [16, 16, 128], strides = [1, 1, 1]} : vector<18x18x128xf32> to vector<16x16x128xf32>
    %52 = vector.extract_strided_slice %23 {offsets = [3, 0], sizes = [1, 128], strides = [1, 1]} : vector<9x128xf32> to vector<1x128xf32>
    %53 = vector.shape_cast %52 : vector<1x128xf32> to vector<128xf32>
    %54 = vector.shape_cast %53 : vector<128xf32> to vector<1x1x128xf32>
    %55 = vector.broadcast %54 : vector<1x1x128xf32> to vector<16x16x128xf32>
    %56 = arith.mulf %51, %55 : vector<16x16x128xf32>
    %57 = arith.addf %50, %56 : vector<16x16x128xf32>
    %58 = vector.extract_strided_slice %22 {offsets = [1, 2, 0], sizes = [16, 16, 128], strides = [1, 1, 1]} : vector<18x18x128xf32> to vector<16x16x128xf32>
    %59 = vector.extract_strided_slice %23 {offsets = [5, 0], sizes = [1, 128], strides = [1, 1]} : vector<9x128xf32> to vector<1x128xf32>
    %60 = vector.shape_cast %59 : vector<1x128xf32> to vector<128xf32>
    %61 = vector.shape_cast %60 : vector<128xf32> to vector<1x1x128xf32>
    %62 = vector.broadcast %61 : vector<1x1x128xf32> to vector<16x16x128xf32>
    %63 = arith.mulf %58, %62 : vector<16x16x128xf32>
    %64 = arith.addf %57, %63 : vector<16x16x128xf32>
    %65 = vector.extract_strided_slice %22 {offsets = [2, 0, 0], sizes = [16, 16, 128], strides = [1, 1, 1]} : vector<18x18x128xf32> to vector<16x16x128xf32>
    %66 = vector.extract_strided_slice %23 {offsets = [6, 0], sizes = [1, 128], strides = [1, 1]} : vector<9x128xf32> to vector<1x128xf32>
    %67 = vector.shape_cast %66 : vector<1x128xf32> to vector<128xf32>
    %68 = vector.shape_cast %67 : vector<128xf32> to vector<1x1x128xf32>
    %69 = vector.broadcast %68 : vector<1x1x128xf32> to vector<16x16x128xf32>
    %70 = arith.mulf %65, %69 : vector<16x16x128xf32>
    %71 = arith.addf %64, %70 : vector<16x16x128xf32>
    %72 = vector.extract_strided_slice %22 {offsets = [2, 1, 0], sizes = [16, 16, 128], strides = [1, 1, 1]} : vector<18x18x128xf32> to vector<16x16x128xf32>
    %73 = vector.extract_strided_slice %23 {offsets = [7, 0], sizes = [1, 128], strides = [1, 1]} : vector<9x128xf32> to vector<1x128xf32>
    %74 = vector.shape_cast %73 : vector<1x128xf32> to vector<128xf32>
    %75 = vector.shape_cast %74 : vector<128xf32> to vector<1x1x128xf32>
    %76 = vector.broadcast %75 : vector<1x1x128xf32> to vector<16x16x128xf32>
    %77 = arith.mulf %72, %76 : vector<16x16x128xf32>
    %78 = arith.addf %71, %77 : vector<16x16x128xf32>
    %79 = vector.extract_strided_slice %22 {offsets = [2, 2, 0], sizes = [16, 16, 128], strides = [1, 1, 1]} : vector<18x18x128xf32> to vector<16x16x128xf32>
    %80 = vector.extract_strided_slice %23 {offsets = [8, 0], sizes = [1, 128], strides = [1, 1]} : vector<9x128xf32> to vector<1x128xf32>
    %81 = vector.shape_cast %80 : vector<1x128xf32> to vector<128xf32>
    %82 = vector.shape_cast %81 : vector<128xf32> to vector<1x1x128xf32>
    %83 = vector.broadcast %82 : vector<1x1x128xf32> to vector<16x16x128xf32>
    %84 = arith.mulf %79, %83 : vector<16x16x128xf32>
    %85 = arith.addf %78, %84 : vector<16x16x128xf32>
    %c0_22 = arith.constant 0 : index
    %c0_23 = arith.constant 0 : index
    %86 = vector.load %arg5[%c0_22, %c0_23] : memref<1x128xf32, #tpu.memory_space<vmem>>, vector<1x128xf32>
    %87 = vector.shape_cast %86 : vector<1x128xf32> to vector<1x1x128xf32>
    %88 = vector.broadcast %87 : vector<1x1x128xf32> to vector<16x16x128xf32>
    %89 = arith.addf %85, %88 : vector<16x16x128xf32>
    %cst_24 = arith.constant 3.000000e+00 : f32
    %90 = vector.broadcast %cst_24 : f32 to vector<16x16x128xf32>
    %91 = arith.addf %89, %90 : vector<16x16x128xf32>
    %cst_25 = arith.constant 0.000000e+00 : f32
    %cst_26 = arith.constant 6.000000e+00 : f32
    %92 = vector.broadcast %cst_25 : f32 to vector<16x16x128xf32>
    %93 = arith.maximumf %92, %91 : vector<16x16x128xf32>
    %94 = vector.broadcast %cst_26 : f32 to vector<16x16x128xf32>
    %95 = arith.minimumf %94, %93 : vector<16x16x128xf32>
    %96 = arith.mulf %89, %95 : vector<16x16x128xf32>
    %cst_27 = arith.constant 0.166666672 : f32
    %97 = vector.broadcast %cst_27 : f32 to vector<16x16x128xf32>
    %98 = arith.mulf %96, %97 : vector<16x16x128xf32>
    %99 = vector.shape_cast %98 : vector<16x16x128xf32> to vector<256x128xf32>
    %100 = arith.truncf %99 : vector<256x128xf32> to vector<256x128xbf16>
    %c0_28 = arith.constant 0 : index
    %c0_29 = arith.constant 0 : index
    %101 = vector.load %arg6[%c0_28, %c0_29] : memref<128x128xbf16, #tpu.memory_space<vmem>>, vector<128x128xbf16>
    %cst_30 = arith.constant dense<0.000000e+00> : vector<256x128xf32>
    %102 = tpu.matmul %100, %101, %cst_30 {dimension_numbers = #tpu.dot_dimension_numbers<[1], [0], [0], [1], [0, 0, 1, 1], [], []>} : vector<256x128xbf16>, vector<128x128xbf16>, vector<256x128xf32> -> vector<256x128xf32>
    %c0_31 = arith.constant 0 : index
    %c0_32 = arith.constant 0 : index
    %103 = vector.load %arg7[%c0_31, %c0_32] : memref<1x128xf32, #tpu.memory_space<vmem>>, vector<1x128xf32>
    %104 = vector.broadcast %103 : vector<1x128xf32> to vector<256x128xf32>
    %105 = arith.addf %102, %104 : vector<256x128xf32>
    %106 = vector.shape_cast %105 : vector<256x128xf32> to vector<16x16x128xf32>
    %107 = arith.addf %1, %106 : vector<16x16x128xf32>
    %c0_33 = arith.constant 0 : index
    %c0_34 = arith.constant 0 : index
    %c0_35 = arith.constant 0 : index
    %c0_36 = arith.constant 0 : index
    %108 = vector.load %arg8[%c0_33, %c0_34, %c0_35, %c0_36] : memref<1x16x16x128xf32, #tpu.memory_space<vmem>>, vector<1x16x16x128xf32>
    %109 = vector.shape_cast %108 : vector<1x16x16x128xf32> to vector<16x16x128xf32>
    %110 = vector.shape_cast %107 : vector<16x16x128xf32> to vector<1x16x16x128xf32>
    tpu.vector_store %arg8[%c0_33, %c0_34, %c0_35, %c0_36], %110 {strides = array<i32>} : memref<1x16x16x128xf32, #tpu.memory_space<vmem>>, vector<1x16x16x128xf32>,
    return
  }
  func.func @transform_0(%arg0: i32) -> (i32, i32, i32, i32) {
    %c0_i32 = arith.constant 0 : i32
    %c0_i32_0 = arith.constant 0 : i32
    %c0_i32_1 = arith.constant 0 : i32
    %c0_i32_2 = arith.constant 0 : i32
    return %arg0, %c0_i32, %c0_i32_0, %c0_i32_1 : i32, i32, i32, i32
  }
  func.func @transform_1(%arg0: i32) -> (i32, i32) {
    %c0_i32 = arith.constant 0 : i32
    %c0_i32_0 = arith.constant 0 : i32
    %c0_i32_1 = arith.constant 0 : i32
    return %c0_i32, %c0_i32_0 : i32, i32
  }
  func.func @transform_2(%arg0: i32) -> (i32, i32) {
    %c0_i32 = arith.constant 0 : i32
    %c0_i32_0 = arith.constant 0 : i32
    %c0_i32_1 = arith.constant 0 : i32
    return %c0_i32, %c0_i32_0 : i32, i32
  }
  func.func @transform_3(%arg0: i32) -> (i32, i32) {
    %c0_i32 = arith.constant 0 : i32
    %c0_i32_0 = arith.constant 0 : i32
    %c0_i32_1 = arith.constant 0 : i32
    return %c0_i32, %c0_i32_0 : i32, i32
  }
  func.func @transform_4(%arg0: i32) -> (i32, i32) {
    %c0_i32 = arith.constant 0 : i32
    %c0_i32_0 = arith.constant 0 : i32
    %c0_i32_1 = arith.constant 0 : i32
    return %c0_i32, %c0_i32_0 : i32, i32
  }
  func.func @transform_5(%arg0: i32) -> (i32, i32) {
    %c0_i32 = arith.constant 0 : i32
    %c0_i32_0 = arith.constant 0 : i32
    %c0_i32_1 = arith.constant 0 : i32
    return %c0_i32, %c0_i32_0 : i32, i32
  }
  func.func @transform_6(%arg0: i32) -> (i32, i32) {
    %c0_i32 = arith.constant 0 : i32
    %c0_i32_0 = arith.constant 0 : i32
    %c0_i32_1 = arith.constant 0 : i32
    return %c0_i32, %c0_i32_0 : i32, i32
  }
  func.func @transform_7(%arg0: i32) -> (i32, i32, i32, i32) {
    %c0_i32 = arith.constant 0 : i32
    %c0_i32_0 = arith.constant 0 : i32
    %c0_i32_1 = arith.constant 0 : i32
    %c0_i32_2 = arith.constant 0 : i32
    return %arg0, %c0_i32, %c0_i32_0, %c0_i32_1 : i32, i32, i32, i32
  }
}

</mosaic_0001>

<llo_original>
// kernel: res_block_forward.1
$region0: #{res_block_forward.1}
  #allocation0 [shape = 'u32[]', space=smem, size = 0x4, offset = 0x4, fixed_abs, tag = 'smem constant byte address 0x4 - core index']
  #allocation1 [shape = 'u32[72,128]{1,0:T(1,128)}', space=vmem, size = 0x9000, scoped, tag = 'internal scratch']
  #allocation2 [shape = 'f32[18,18,128]{2,1,0:T(8,128)}', space=vmem, size = 0x36000, scoped, tag = 'scratch operand']
  %s0 = inlined_call_operand.vmem [shape: f32[2,16,16,128], index: 0, kind: input, shape index: {}]
  %s1 = inlined_call_operand.vmem [shape: bf16[128,128], index: 1, kind: input, shape index: {}]
  %s2 = inlined_call_operand.vmem [shape: f32[1,128], index: 2, kind: input, shape index: {}]
  %s3 = inlined_call_operand.vmem [shape: f32[9,128], index: 3, kind: input, shape index: {}]
  %s4 = inlined_call_operand.vmem [shape: f32[1,128], index: 4, kind: input, shape index: {}]
  %s5 = inlined_call_operand.vmem [shape: bf16[128,128], index: 5, kind: input, shape index: {}]
  %s6 = inlined_call_operand.vmem [shape: f32[1,128], index: 6, kind: input, shape index: {}]
  %s7 = inlined_call_operand.hbm [shape: f32[2,16,16,128], index: 7, kind: output, shape index: {}]
  %s8 = sld [smem:[#allocation0]]
  $region61: #{res_block_forward.1} parent=0
    _
  %s10 = ssub.s32 1, %s8
  %s11 = scalar_select 0, %s10, %s8
  $region1: #{res_block_forward.1} parent=0
    #allocation3 [shape = 'u8[262144]{0}', space=vmem, size = 0x40000, scoped, tag = 'output window, operand 0']
    #allocation4 [shape = 's32[2]{0}', space=sflag, size = 0x8, scoped, tag = 'scoped memory for res_block_forward.1']
    %12 = vsyncpa [#allocation4], 0
    %s13 = scalar_lea.sflag [#allocation4], 1
    %14 = vsyncpa %s13, 0
    loop: start=0, step=1, limit=4
    $region2: #{res_block_forward.1} parent=1 // loop_pre_header
      _
    $region3: #{res_block_forward.1} parent=1 // loop_header
      %s16 = sphi 0, %s20
      %p17 = scmp.ge.s32.totalorder %s16, 4
      %s26 = sphi 0, %s28
      %s29 = sphi 0, %s26
      %s30 = sphi 0, %s29
      %s46 = sphi 0, %s30
      %s50 = sphi 0, %s50
      %s52 = sphi 0, %s50
      %s53 = sphi 0, %s52
      %s67 = sphi 0, %s53
      %s71 = sphi 0, %s71
      %s73 = sphi 0, %s71
      %s74 = sphi 0, %s73
      %s88 = sphi 0, %s74
      %s92 = sphi 0, %s92
      %s94 = sphi 0, %s92
      %s95 = sphi 0, %s94
      %s109 = sphi 0, %s95
      %s113 = sphi 0, %s113
      %s115 = sphi 0, %s113
      %s116 = sphi 0, %s115
      %s130 = sphi 0, %s116
      %s134 = sphi 0, %s134
      %s136 = sphi 0, %s134
      %s137 = sphi 0, %s136
      %s151 = sphi 0, %s137
      %s155 = sphi 0, %s155
      %s157 = sphi 0, %s155
      %s158 = sphi 0, %s157
      %s172 = sphi 0, %s158
      %s178 = sphi 0, %s180
      %s181 = sphi 0, %s178
      %s182 = sphi 0, %s181
      %s198 = sphi 0, %s182
    $region4: #{res_block_forward.1} parent=1 // loop_header_branch
      %19 = sbr.rel (%p17) target = $region8
    $region5: #{res_block_forward.1} parent=1 // loop_body
      %s21 = ssub.s32 %s16, 1
      %s22 = ssub.s32 %s16, 2
      %s23 = sadd.s32 %s16, 1
      %s24 = ssub.s32 %s16, %s23
      %p25 = scmp.eq.s32.totalorder %s24, 0
      %s27 = sadd.s32 %s26, 1
      %s28 = scalar_select %p25, %s26, %s27
      %p31 = pneg %p25
      %p32 = scmp.eq.s32.totalorder %s16, 1
      %p33 = por %p31, %p32
      %p34 = scmp.ne.s32.totalorder %s26, %s29
      %p35 = scmp.eq.s32.totalorder %s16, 0
      %p36 = por %p34, %p35
      %p37 = scmp.ne.s32.totalorder %s26, %s29
      %p38 = scmp.eq.s32.totalorder %s21, 1
      %p39 = por %p37, %p38
      %p40 = scmp.ne.s32.totalorder %s29, %s30
      %p41 = scmp.eq.s32.totalorder %s21, 0
      %p42 = por %p40, %p41
      %p43 = scmp.ne.s32.totalorder %s29, %s30
      %p44 = scmp.eq.s32.totalorder %s22, 1
      %p45 = por %p43, %p44
      %p47 = scmp.ne.s32.totalorder %s30, %s46
      %p48 = scmp.eq.s32.totalorder %s22, 0
      %p49 = por %p47, %p48
      %s51 = sadd.s32 %s50, 1
      %p54 = scmp.eq.s32.totalorder %s16, 1
      %p55 = scmp.ne.s32.totalorder %s50, %s52
      %p56 = scmp.eq.s32.totalorder %s16, 0
      %p57 = por %p55, %p56
      %p58 = scmp.ne.s32.totalorder %s50, %s52
      %p59 = scmp.eq.s32.totalorder %s21, 1
      %p60 = por %p58, %p59
      %p61 = scmp.ne.s32.totalorder %s52, %s53
      %p62 = scmp.eq.s32.totalorder %s21, 0
      %p63 = por %p61, %p62
      %p64 = scmp.ne.s32.totalorder %s52, %s53
      %p65 = scmp.eq.s32.totalorder %s22, 1
      %p66 = por %p64, %p65
      %p68 = scmp.ne.s32.totalorder %s53, %s67
      %p69 = scmp.eq.s32.totalorder %s22, 0
      %p70 = por %p68, %p69
      %s72 = sadd.s32 %s71, 1
      %p75 = scmp.eq.s32.totalorder %s16, 1
      %p76 = scmp.ne.s32.totalorder %s71, %s73
      %p77 = scmp.eq.s32.totalorder %s16, 0
      %p78 = por %p76, %p77
      %p79 = scmp.ne.s32.totalorder %s71, %s73
      %p80 = scmp.eq.s32.totalorder %s21, 1
      %p81 = por %p79, %p80
      %p82 = scmp.ne.s32.totalorder %s73, %s74
      %p83 = scmp.eq.s32.totalorder %s21, 0
      %p84 = por %p82, %p83
      %p85 = scmp.ne.s32.totalorder %s73, %s74
      %p86 = scmp.eq.s32.totalorder %s22, 1
      %p87 = por %p85, %p86
      %p89 = scmp.ne.s32.totalorder %s74, %s88
      %p90 = scmp.eq.s32.totalorder %s22, 0
      %p91 = por %p89, %p90
      %s93 = sadd.s32 %s92, 1
      %p96 = scmp.eq.s32.totalorder %s16, 1
      %p97 = scmp.ne.s32.totalorder %s92, %s94
      %p98 = scmp.eq.s32.totalorder %s16, 0
      %p99 = por %p97, %p98
      %p100 = scmp.ne.s32.totalorder %s92, %s94
      %p101 = scmp.eq.s32.totalorder %s21, 1
      %p102 = por %p100, %p101
      %p103 = scmp.ne.s32.totalorder %s94, %s95
      %p104 = scmp.eq.s32.totalorder %s21, 0
      %p105 = por %p103, %p104
      %p106 = scmp.ne.s32.totalorder %s94, %s95
      %p107 = scmp.eq.s32.totalorder %s22, 1
      %p108 = por %p106, %p107
      %p110 = scmp.ne.s32.totalorder %s95, %s109
      %p111 = scmp.eq.s32.totalorder %s22, 0
      %p112 = por %p110, %p111
      %s114 = sadd.s32 %s113, 1
      %p117 = scmp.eq.s32.totalorder %s16, 1
      %p118 = scmp.ne.s32.totalorder %s113, %s115
      %p119 = scmp.eq.s32.totalorder %s16, 0
      %p120 = por %p118, %p119
      %p121 = scmp.ne.s32.totalorder %s113, %s115
      %p122 = scmp.eq.s32.totalorder %s21, 1
      %p123 = por %p121, %p122
      %p124 = scmp.ne.s32.totalorder %s115, %s116
      %p125 = scmp.eq.s32.totalorder %s21, 0
      %p126 = por %p124, %p125
      %p127 = scmp.ne.s32.totalorder %s115, %s116
      %p128 = scmp.eq.s32.totalorder %s22, 1
      %p129 = por %p127, %p128
      %p131 = scmp.ne.s32.totalorder %s116, %s130
      %p132 = scmp.eq.s32.totalorder %s22, 0
      %p133 = por %p131, %p132
      %s135 = sadd.s32 %s134, 1
      %p138 = scmp.eq.s32.totalorder %s16, 1
      %p139 = scmp.ne.s32.totalorder %s134, %s136
      %p140 = scmp.eq.s32.totalorder %s16, 0
      %p141 = por %p139, %p140
      %p142 = scmp.ne.s32.totalorder %s134, %s136
      %p143 = scmp.eq.s32.totalorder %s21, 1
      %p144 = por %p142, %p143
      %p145 = scmp.ne.s32.totalorder %s136, %s137
      %p146 = scmp.eq.s32.totalorder %s21, 0
      %p147 = por %p145, %p146
      %p148 = scmp.ne.s32.totalorder %s136, %s137
      %p149 = scmp.eq.s32.totalorder %s22, 1
      %p150 = por %p148, %p149
      %p152 = scmp.ne.s32.totalorder %s137, %s151
      %p153 = scmp.eq.s32.totalorder %s22, 0
      %p154 = por %p152, %p153
      %s156 = sadd.s32 %s155, 1
      %p159 = scmp.eq.s32.totalorder %s16, 1
      %p160 = scmp.ne.s32.totalorder %s155, %s157
      %p161 = scmp.eq.s32.totalorder %s16, 0
      %p162 = por %p160, %p161
      %p163 = scmp.ne.s32.totalorder %s155, %s157
      %p164 = scmp.eq.s32.totalorder %s21, 1
      %p165 = por %p163, %p164
      %p166 = scmp.ne.s32.totalorder %s157, %s158
      %p167 = scmp.eq.s32.totalorder %s21, 0
      %p168 = por %p166, %p167
      %p169 = scmp.ne.s32.totalorder %s157, %s158
      %p170 = scmp.eq.s32.totalorder %s22, 1
      %p171 = por %p169, %p170
      %p173 = scmp.ne.s32.totalorder %s158, %s172
      %p174 = scmp.eq.s32.totalorder %s22, 0
      %p175 = por %p173, %p174
      %s176 = ssub.s32 %s16, %s23
      %p177 = scmp.eq.s32.totalorder %s176, 0
      %s179 = sadd.s32 %s178, 1
      %s180 = scalar_select %p177, %s178, %s179
      %p183 = pneg %p177
      %p184 = scmp.eq.s32.totalorder %s16, 1
      %p185 = por %p183, %p184
      %p186 = scmp.ne.s32.totalorder %s178, %s181
      %p187 = scmp.eq.s32.totalorder %s16, 0
      %p188 = por %p186, %p187
      %p189 = scmp.ne.s32.totalorder %s178, %s181
      %p190 = scmp.eq.s32.totalorder %s21, 1
      %p191 = por %p189, %p190
      %p192 = scmp.ne.s32.totalorder %s181, %s182
      %p193 = scmp.eq.s32.totalorder %s21, 0
      %p194 = por %p192, %p193
      %p195 = scmp.ne.s32.totalorder %s181, %s182
      %p196 = scmp.eq.s32.totalorder %s22, 1
      %p197 = por %p195, %p196
      %p199 = scmp.ne.s32.totalorder %s182, %s198
      %p200 = scmp.eq.s32.totalorder %s22, 0
      %p201 = por %p199, %p200
      %p202 = scmp.le.s32.totalorder 1, %s16
      %p203 = scmp.lt.s32.totalorder %s16, 3
      %p204 = pnand %p202, %p203
      %p205 = pneg %p204
      // Predicated region
      $region9: #{res_block_forward.1} parent=5 // pred_check
        _
      $region10: #{res_block_forward.1} parent=5 // pred_check_branch
        %207 = sbr.rel (%p204) target = $region12
      $region11: #{res_block_forward.1} parent=5 // pred_region
        %s208 = ssub.s32 %s16, 1
        // Predicated region
        $region13: #{res_block_forward.1} parent=11 // pred_check
          %p209 = pneg %p63
        $region14: #{res_block_forward.1} parent=11 // pred_check_branch
          %211 = sbr.rel (%p209) target = $region16
        $region15: #{res_block_forward.1} parent=11 // pred_region
          _
        $region16: #{res_block_forward.1} parent=11 // pred_fallthru
          _
        // Predicated region
        $region17: #{res_block_forward.1} parent=11 // pred_check
          %p212 = pneg %p84
        $region18: #{res_block_forward.1} parent=11 // pred_check_branch
          %214 = sbr.rel (%p212) target = $region20
        $region19: #{res_block_forward.1} parent=11 // pred_region
          _
        $region20: #{res_block_forward.1} parent=11 // pred_fallthru
          _
        // Predicated region
        $region21: #{res_block_forward.1} parent=11 // pred_check
          %p215 = pneg %p105
        $region22: #{res_block_forward.1} parent=11 // pred_check_branch
          %217 = sbr.rel (%p215) target = $region24
        $region23: #{res_block_forward.1} parent=11 // pred_region
          _
        $region24: #{res_block_forward.1} parent=11 // pred_fallthru
          _
        // Predicated region
        $region25: #{res_block_forward.1} parent=11 // pred_check
          %p218 = pneg %p126
        $region26: #{res_block_forward.1} parent=11 // pred_check_branch
          %220 = sbr.rel (%p218) target = $region28
        $region27: #{res_block_forward.1} parent=11 // pred_region
          _
        $region28: #{res_block_forward.1} parent=11 // pred_fallthru
          _
        // Predicated region
        $region29: #{res_block_forward.1} parent=11 // pred_check
          %p221 = pneg %p147
        $region30: #{res_block_forward.1} parent=11 // pred_check_branch
          %223 = sbr.rel (%p221) target = $region32
        $region31: #{res_block_forward.1} parent=11 // pred_region
          _
        $region32: #{res_block_forward.1} parent=11 // pred_fallthru
          _
        // Predicated region
        $region33: #{res_block_forward.1} parent=11 // pred_check
          %p224 = pneg %p168
        $region34: #{res_block_forward.1} parent=11 // pred_check_branch
          %226 = sbr.rel (%p224) target = $region36
        $region35: #{res_block_forward.1} parent=11 // pred_region
          _
        $region36: #{res_block_forward.1} parent=11 // pred_fallthru
          _
      $region12: #{res_block_forward.1} parent=5 // pred_fallthru
        _
      %p227 = scmp.lt.s32.totalorder %s16, 2
      // Predicated region
      $region37: #{res_block_forward.1} parent=5 // pred_check
        %p228 = pneg %p227
      $region38: #{res_block_forward.1} parent=5 // pred_check_branch
        %230 = sbr.rel (%p228) target = $region40
      $region39: #{res_block_forward.1} parent=5 // pred_region
        // Predicated region
        $region41: #{res_block_forward.1} parent=39 // pred_check
          %p231 = pneg %p36
        $region42: #{res_block_forward.1} parent=39 // pred_check_branch
          %233 = sbr.rel (%p231) target = $region44
        $region43: #{res_block_forward.1} parent=39 // pred_region
          %p234 = scmp.lt.s32.totalorder %s16, 1
          %s235 = scalar_select %p234, %s16, 1
          %s236 = smul.addr %s235, 32
          %s237 = smul.addr %s236, 8
          %s238 = scalar_lea.vmem %s0, %s237
        $region44: #{res_block_forward.1} parent=39 // pred_fallthru
          _
      $region40: #{res_block_forward.1} parent=5 // pred_fallthru
        _
      %p239 = scmp.le.s32.totalorder 1, %s16
      %p240 = scmp.lt.s32.totalorder %s16, 3
      %p241 = pnand %p239, %p240
      %p242 = pneg %p241
      // Predicated region
      $region45: #{res_block_forward.1} parent=5 // pred_check
        _
      $region46: #{res_block_forward.1} parent=5 // pred_check_branch
        %244 = sbr.rel (%p241) target = $region48
      $region47: #{res_block_forward.1} parent=5 // pred_region
        %s245 = ssub.s32 %s16, 1
        %p246 = scmp.lt.s32.totalorder %s21, 1
        %s247 = scalar_select %p246, %s21, 1
        %s248 = smul.addr %s247, 32
        %s249 = smul.addr %s248, 8
        %s250 = scalar_lea.vmem %s0, %s249
        %p251 = pneg %p42
        %p252 = pneg %p39
        %p253 = pneg %p63
        %p254 = pneg %p60
        %p255 = pneg %p84
        %p256 = pneg %p81
        %p257 = pneg %p105
        %p258 = pneg %p102
        %p259 = pneg %p126
        %p260 = pneg %p123
        %p261 = pneg %p147
        %p262 = pneg %p144
        %p263 = pneg %p168
        %p264 = pneg %p165
        %p265 = pneg %p194
        %p266 = pneg %p191
        %s267 = sand.u32 %s181, 1
        %s268 = scalar_lea.sflag [#allocation4], %s267
        %s269 = sand.u32 %s181, 1
        %s270 = smul.addr %s269, 256
        %s271 = scalar_lea.vmem [#allocation3], %s270
        %p272 = scmp.lt.s32.totalorder %s21, 1
        %s273 = scalar_select %p272, %s21, 1
        %s274 = smul.addr %s273, 32
        %s275 = smul.addr %s274, 8
        %s276 = scalar_lea.vmem %s0, %s275
        %v277 = vld [vmem:[%s276] sm:$0xff]
        %v278 = vld [vmem:[%s276 + $0x8] sm:$0xff]
        %v279 = vld [vmem:[%s276 + $0x10] sm:$0xff]
        %v280 = vld [vmem:[%s276 + $0x18] sm:$0xff]
        %v281 = vld [vmem:[%s276 + $0x20] sm:$0xff]
        %v282 = vld [vmem:[%s276 + $0x28] sm:$0xff]
        %v283 = vld [vmem:[%s276 + $0x30] sm:$0xff]
        %v284 = vld [vmem:[%s276 + $0x38] sm:$0xff]
        %v285 = vld [vmem:[%s276 + $0x40] sm:$0xff]
        %v286 = vld [vmem:[%s276 + $0x48] sm:$0xff]
        %v287 = vld [vmem:[%s276 + $0x50] sm:$0xff]
        %v288 = vld [vmem:[%s276 + $0x58] sm:$0xff]
        %v289 = vld [vmem:[%s276 + $0x60] sm:$0xff]
        %v290 = vld [vmem:[%s276 + $0x68] sm:$0xff]
        %v291 = vld [vmem:[%s276 + $0x70] sm:$0xff]
        %v292 = vld [vmem:[%s276 + $0x78] sm:$0xff]
        %v293 = vld [vmem:[%s276 + $0x80] sm:$0xff]
        %v294 = vld [vmem:[%s276 + $0x88] sm:$0xff]
        %v295 = vld [vmem:[%s276 + $0x90] sm:$0xff]
        %v296 = vld [vmem:[%s276 + $0x98] sm:$0xff]
        %v297 = vld [vmem:[%s276 + $0xa0] sm:$0xff]
        %v298 = vld [vmem:[%s276 + $0xa8] sm:$0xff]
        %v299 = vld [vmem:[%s276 + $0xb0] sm:$0xff]
        %v300 = vld [vmem:[%s276 + $0xb8] sm:$0xff]
        %v301 = vld [vmem:[%s276 + $0xc0] sm:$0xff]
        %v302 = vld [vmem:[%s276 + $0xc8] sm:$0xff]
        %v303 = vld [vmem:[%s276 + $0xd0] sm:$0xff]
        %v304 = vld [vmem:[%s276 + $0xd8] sm:$0xff]
        %v305 = vld [vmem:[%s276 + $0xe0] sm:$0xff]
        %v306 = vld [vmem:[%s276 + $0xe8] sm:$0xff]
        %v307 = vld [vmem:[%s276 + $0xf0] sm:$0xff]
        %v308 = vld [vmem:[%s276 + $0xf8] sm:$0xff]
        %v309 = vpack.c.bf16 %v278, %v277
        %v310 = vpack.c.bf16 %v280, %v279
        %v311 = vpack.c.bf16 %v282, %v281
        %v312 = vpack.c.bf16 %v284, %v283
        %v313 = vpack.c.bf16 %v286, %v285
        %v314 = vpack.c.bf16 %v288, %v287
        %v315 = vpack.c.bf16 %v290, %v289
        %v316 = vpack.c.bf16 %v292, %v291
        %v317 = vpack.c.bf16 %v294, %v293
        %v318 = vpack.c.bf16 %v296, %v295
        %v319 = vpack.c.bf16 %v298, %v297
        %v320 = vpack.c.bf16 %v300, %v299
        %v321 = vpack.c.bf16 %v302, %v301
        %v322 = vpack.c.bf16 %v304, %v303
        %v323 = vpack.c.bf16 %v306, %v305
        %v324 = vpack.c.bf16 %v308, %v307
        %v325 = vld [vmem:[%s1] sm:$0xf]
        %v326 = vld [vmem:[%s1 + $0x4] sm:$0xf]
        %v327 = vld [vmem:[%s1 + $0x8] sm:$0xf]
        %v328 = vld [vmem:[%s1 + $0xc] sm:$0xf]
        %v329 = vld [vmem:[%s1 + $0x10] sm:$0xf]
        %v330 = vld [vmem:[%s1 + $0x14] sm:$0xf]
        %v331 = vld [vmem:[%s1 + $0x18] sm:$0xf]
        %v332 = vld [vmem:[%s1 + $0x1c] sm:$0xf]
        %v333 = vld [vmem:[%s1 + $0x20] sm:$0xf]
        %v334 = vld [vmem:[%s1 + $0x24] sm:$0xf]
        %v335 = vld [vmem:[%s1 + $0x28] sm:$0xf]
        %v336 = vld [vmem:[%s1 + $0x2c] sm:$0xf]
        %v337 = vld [vmem:[%s1 + $0x30] sm:$0xf]
        %v338 = vld [vmem:[%s1 + $0x34] sm:$0xf]
        %v339 = vld [vmem:[%s1 + $0x38] sm:$0xf]
        %v340 = vld [vmem:[%s1 + $0x3c] sm:$0xf]
        %v341 = vld [vmem:[%s2] sm:$0x1]
        %v343 = vperm.slane %v341, 0
        %v361 = vunpack.c.l.b16 %v325
        %v362 = vunpack.c.l.b16 %v326
        %v363 = vunpack.c.l.b16 %v327
        %v364 = vunpack.c.l.b16 %v328
        %v365 = vunpack.c.l.b16 %v329
        %v366 = vunpack.c.l.b16 %v330
        %v367 = vunpack.c.l.b16 %v331
        %v368 = vunpack.c.l.b16 %v332
        %v369 = vunpack.c.l.b16 %v333
        %v370 = vunpack.c.l.b16 %v334
        %v371 = vunpack.c.l.b16 %v335
        %v372 = vunpack.c.l.b16 %v336
        %v373 = vunpack.c.l.b16 %v337
        %v374 = vunpack.c.l.b16 %v338
        %v375 = vunpack.c.l.b16 %v339
        %v376 = vunpack.c.l.b16 %v340
        %v377 = vpack.c.b16 %v362, %v361
        %v378 = vpack.c.b16 %v364, %v363
        %v379 = vpack.c.b16 %v366, %v365
        %v380 = vpack.c.b16 %v368, %v367
        %v381 = vpack.c.b16 %v370, %v369
        %v382 = vpack.c.b16 %v372, %v371
        %v383 = vpack.c.b16 %v374, %v373
        %v384 = vpack.c.b16 %v376, %v375
        %393 = vmatpush.bf16.msra.mxu0 %v384
        %394 = vmatpush.bf16.msra.mxu0 %v383
        %395 = vmatpush.bf16.msra.mxu0 %v382
        %396 = vmatpush.bf16.msra.mxu0 %v381
        %397 = vmatpush.bf16.msra.mxu0 %v380
        %398 = vmatpush.bf16.msra.mxu0 %v379
        %399 = vmatpush.bf16.msra.mxu0 %v378
        %400 = vmatpush.bf16.msra.mxu0 %v377
        %401 = vmatmul.bf16.gmra.mxu0 %v309
        %v402 = vpop.f32.mrf.mxu0
        %v403 = vadd.f32 %v343, %v402
        %v404 = vpop.f32.mrf.mxu0
        %v405 = vadd.f32 %v343, %v404
        %406 = vmatmul.bf16.gmra.mxu0 %v310
        %v407 = vpop.f32.mrf.mxu0
        %v408 = vadd.f32 %v343, %v407
        %v409 = vpop.f32.mrf.mxu0
        %v410 = vadd.f32 %v343, %v409
        %411 = vmatmul.bf16.gmra.mxu0 %v311
        %v412 = vpop.f32.mrf.mxu0
        %v413 = vadd.f32 %v343, %v412
        %v414 = vpop.f32.mrf.mxu0
        %v415 = vadd.f32 %v343, %v414
        %416 = vmatmul.bf16.gmra.mxu0 %v312
        %v417 = vpop.f32.mrf.mxu0
        %v418 = vadd.f32 %v343, %v417
        %v419 = vpop.f32.mrf.mxu0
        %v420 = vadd.f32 %v343, %v419
        %421 = vmatmul.bf16.gmra.mxu0 %v313
        %v422 = vpop.f32.mrf.mxu0
        %v423 = vadd.f32 %v343, %v422
        %v424 = vpop.f32.mrf.mxu0
        %v425 = vadd.f32 %v343, %v424
        %426 = vmatmul.bf16.gmra.mxu0 %v314
        %v427 = vpop.f32.mrf.mxu0
        %v428 = vadd.f32 %v343, %v427
        %v429 = vpop.f32.mrf.mxu0
        %v430 = vadd.f32 %v343, %v429
        %431 = vmatmul.bf16.gmra.mxu0 %v315
        %v432 = vpop.f32.mrf.mxu0
        %v433 = vadd.f32 %v343, %v432
        %v434 = vpop.f32.mrf.mxu0
        %v435 = vadd.f32 %v343, %v434
        %436 = vmatmul.bf16.gmra.mxu0 %v316
        %v437 = vpop.f32.mrf.mxu0
        %v438 = vadd.f32 %v343, %v437
        %v439 = vpop.f32.mrf.mxu0
        %v440 = vadd.f32 %v343, %v439
        %441 = vmatmul.bf16.gmra.mxu0 %v317
        %v442 = vpop.f32.mrf.mxu0
        %v443 = vadd.f32 %v343, %v442
        %v444 = vpop.f32.mrf.mxu0
        %v445 = vadd.f32 %v343, %v444
        %446 = vmatmul.bf16.gmra.mxu0 %v318
        %v447 = vpop.f32.mrf.mxu0
        %v448 = vadd.f32 %v343, %v447
        %v449 = vpop.f32.mrf.mxu0
        %v450 = vadd.f32 %v343, %v449
        %451 = vmatmul.bf16.gmra.mxu0 %v319
        %v452 = vpop.f32.mrf.mxu0
        %v453 = vadd.f32 %v343, %v452
        %v454 = vpop.f32.mrf.mxu0
        %v455 = vadd.f32 %v343, %v454
        %456 = vmatmul.bf16.gmra.mxu0 %v320
        %v457 = vpop.f32.mrf.mxu0
        %v458 = vadd.f32 %v343, %v457
        %v459 = vpop.f32.mrf.mxu0
        %v460 = vadd.f32 %v343, %v459
        %461 = vmatmul.bf16.gmra.mxu0 %v321
        %v462 = vpop.f32.mrf.mxu0
        %v463 = vadd.f32 %v343, %v462
        %v464 = vpop.f32.mrf.mxu0
        %v465 = vadd.f32 %v343, %v464
        %466 = vmatmul.bf16.gmra.mxu0 %v322
        %v467 = vpop.f32.mrf.mxu0
        %v468 = vadd.f32 %v343, %v467
        %v469 = vpop.f32.mrf.mxu0
        %v470 = vadd.f32 %v343, %v469
        %471 = vmatmul.bf16.gmra.mxu0 %v323
        %v472 = vpop.f32.mrf.mxu0
        %v473 = vadd.f32 %v343, %v472
        %v474 = vpop.f32.mrf.mxu0
        %v475 = vadd.f32 %v343, %v474
        %476 = vmatmul.bf16.gmra.mxu0 %v324
        %v477 = vpop.f32.mrf.mxu0
        %v478 = vadd.f32 %v343, %v477
        %v479 = vpop.f32.mrf.mxu0
        %v480 = vadd.f32 %v343, %v479
        %481 = vdwg.mxu0
        %v482 = vadd.f32 %v403, 3.0
        %v483 = vadd.f32 %v405, 3.0
        %v484 = vadd.f32 %v408, 3.0
        %v485 = vadd.f32 %v410, 3.0
        %v486 = vadd.f32 %v413, 3.0
        %v487 = vadd.f32 %v415, 3.0
        %v488 = vadd.f32 %v418, 3.0
        %v489 = vadd.f32 %v420, 3.0
        %v490 = vadd.f32 %v423, 3.0
        %v491 = vadd.f32 %v425, 3.0
        %v492 = vadd.f32 %v428, 3.0
        %v493 = vadd.f32 %v430, 3.0
        %v494 = vadd.f32 %v433, 3.0
        %v495 = vadd.f32 %v435, 3.0
        %v496 = vadd.f32 %v438, 3.0
        %v497 = vadd.f32 %v440, 3.0
        %v498 = vadd.f32 %v443, 3.0
        %v499 = vadd.f32 %v445, 3.0
        %v500 = vadd.f32 %v448, 3.0
        %v501 = vadd.f32 %v450, 3.0
        %v502 = vadd.f32 %v453, 3.0
        %v503 = vadd.f32 %v455, 3.0
        %v504 = vadd.f32 %v458, 3.0
        %v505 = vadd.f32 %v460, 3.0
        %v506 = vadd.f32 %v463, 3.0
        %v507 = vadd.f32 %v465, 3.0
        %v508 = vadd.f32 %v468, 3.0
        %v509 = vadd.f32 %v470, 3.0
        %v510 = vadd.f32 %v473, 3.0
        %v511 = vadd.f32 %v475, 3.0
        %v512 = vadd.f32 %v478, 3.0
        %v513 = vadd.f32 %v480, 3.0
        %v514 = vmax.f32 %v482, 0.0
        %v515 = vmax.f32 %v483, 0.0
        %v516 = vmax.f32 %v484, 0.0
        %v517 = vmax.f32 %v485, 0.0
        %v518 = vmax.f32 %v486, 0.0
        %v519 = vmax.f32 %v487, 0.0
        %v520 = vmax.f32 %v488, 0.0
        %v521 = vmax.f32 %v489, 0.0
        %v522 = vmax.f32 %v490, 0.0
        %v523 = vmax.f32 %v491, 0.0
        %v524 = vmax.f32 %v492, 0.0
        %v525 = vmax.f32 %v493, 0.0
        %v526 = vmax.f32 %v494, 0.0
        %v527 = vmax.f32 %v495, 0.0
        %v528 = vmax.f32 %v496, 0.0
        %v529 = vmax.f32 %v497, 0.0
        %v530 = vmax.f32 %v498, 0.0
        %v531 = vmax.f32 %v499, 0.0
        %v532 = vmax.f32 %v500, 0.0
        %v533 = vmax.f32 %v501, 0.0
        %v534 = vmax.f32 %v502, 0.0
        %v535 = vmax.f32 %v503, 0.0
        %v536 = vmax.f32 %v504, 0.0
        %v537 = vmax.f32 %v505, 0.0
        %v538 = vmax.f32 %v506, 0.0
        %v539 = vmax.f32 %v507, 0.0
        %v540 = vmax.f32 %v508, 0.0
        %v541 = vmax.f32 %v509, 0.0
        %v542 = vmax.f32 %v510, 0.0
        %v543 = vmax.f32 %v511, 0.0
        %v544 = vmax.f32 %v512, 0.0
        %v545 = vmax.f32 %v513, 0.0
        %v546 = vmin.f32 %v514, 6.0
        %v547 = vmin.f32 %v515, 6.0
        %v548 = vmin.f32 %v516, 6.0
        %v549 = vmin.f32 %v517, 6.0
        %v550 = vmin.f32 %v518, 6.0
        %v551 = vmin.f32 %v519, 6.0
        %v552 = vmin.f32 %v520, 6.0
        %v553 = vmin.f32 %v521, 6.0
        %v554 = vmin.f32 %v522, 6.0
        %v555 = vmin.f32 %v523, 6.0
        %v556 = vmin.f32 %v524, 6.0
        %v557 = vmin.f32 %v525, 6.0
        %v558 = vmin.f32 %v526, 6.0
        %v559 = vmin.f32 %v527, 6.0
        %v560 = vmin.f32 %v528, 6.0
        %v561 = vmin.f32 %v529, 6.0
        %v562 = vmin.f32 %v530, 6.0
        %v563 = vmin.f32 %v531, 6.0
        %v564 = vmin.f32 %v532, 6.0
        %v565 = vmin.f32 %v533, 6.0
        %v566 = vmin.f32 %v534, 6.0
        %v567 = vmin.f32 %v535, 6.0
        %v568 = vmin.f32 %v536, 6.0
        %v569 = vmin.f32 %v537, 6.0
        %v570 = vmin.f32 %v538, 6.0
        %v571 = vmin.f32 %v539, 6.0
        %v572 = vmin.f32 %v540, 6.0
        %v573 = vmin.f32 %v541, 6.0
        %v574 = vmin.f32 %v542, 6.0
        %v575 = vmin.f32 %v543, 6.0
        %v576 = vmin.f32 %v544, 6.0
        %v577 = vmin.f32 %v545, 6.0
        %v578 = vmul.f32 %v403, %v546
        %v579 = vmul.f32 %v405, %v547
        %v580 = vmul.f32 %v408, %v548
        %v581 = vmul.f32 %v410, %v549
        %v582 = vmul.f32 %v413, %v550
        %v583 = vmul.f32 %v415, %v551
        %v584 = vmul.f32 %v418, %v552
        %v585 = vmul.f32 %v420, %v553
        %v586 = vmul.f32 %v423, %v554
        %v587 = vmul.f32 %v425, %v555
        %v588 = vmul.f32 %v428, %v556
        %v589 = vmul.f32 %v430, %v557
        %v590 = vmul.f32 %v433, %v558
        %v591 = vmul.f32 %v435, %v559
        %v592 = vmul.f32 %v438, %v560
        %v593 = vmul.f32 %v440, %v561
        %v594 = vmul.f32 %v443, %v562
        %v595 = vmul.f32 %v445, %v563
        %v596 = vmul.f32 %v448, %v564
        %v597 = vmul.f32 %v450, %v565
        %v598 = vmul.f32 %v453, %v566
        %v599 = vmul.f32 %v455, %v567
        %v600 = vmul.f32 %v458, %v568
        %v601 = vmul.f32 %v460, %v569
        %v602 = vmul.f32 %v463, %v570
        %v603 = vmul.f32 %v465, %v571
        %v604 = vmul.f32 %v468, %v572
        %v605 = vmul.f32 %v470, %v573
        %v606 = vmul.f32 %v473, %v574
        %v607 = vmul.f32 %v475, %v575
        %v608 = vmul.f32 %v478, %v576
        %v609 = vmul.f32 %v480, %v577
        %v610 = vmul.f32 %v578, 0.16666667
        %v611 = vmul.f32 %v579, 0.16666667
        %v612 = vmul.f32 %v580, 0.16666667
        %v613 = vmul.f32 %v581, 0.16666667
        %v614 = vmul.f32 %v582, 0.16666667
        %v615 = vmul.f32 %v583, 0.16666667
        %v616 = vmul.f32 %v584, 0.16666667
        %v617 = vmul.f32 %v585, 0.16666667
        %v618 = vmul.f32 %v586, 0.16666667
        %v619 = vmul.f32 %v587, 0.16666667
        %v620 = vmul.f32 %v588, 0.16666667
        %v621 = vmul.f32 %v589, 0.16666667
        %v622 = vmul.f32 %v590, 0.16666667
        %v623 = vmul.f32 %v591, 0.16666667
        %v624 = vmul.f32 %v592, 0.16666667
        %v625 = vmul.f32 %v593, 0.16666667
        %v626 = vmul.f32 %v594, 0.16666667
        %v627 = vmul.f32 %v595, 0.16666667
        %v628 = vmul.f32 %v596, 0.16666667
        %v629 = vmul.f32 %v597, 0.16666667
        %v630 = vmul.f32 %v598, 0.16666667
        %v631 = vmul.f32 %v599, 0.16666667
        %v632 = vmul.f32 %v600, 0.16666667
        %v633 = vmul.f32 %v601, 0.16666667
        %v634 = vmul.f32 %v602, 0.16666667
        %v635 = vmul.f32 %v603, 0.16666667
        %v636 = vmul.f32 %v604, 0.16666667
        %v637 = vmul.f32 %v605, 0.16666667
        %v638 = vmul.f32 %v606, 0.16666667
        %v639 = vmul.f32 %v607, 0.16666667
        %v640 = vmul.f32 %v608, 0.16666667
        %v641 = vmul.f32 %v609, 0.16666667
        %642 = vst [vmem:[#allocation2] sm:$0xff] 0.0
        %643 = vst [vmem:[#allocation2 + $0x8] sm:$0xff] 0.0
        %644 = vst [vmem:[#allocation2 + $0x10] sm:$0x3] 0.0
        %645 = vst [vmem:[#allocation2 + $0x18] sm:$0xff] 0.0
        %646 = vst [vmem:[#allocation2 + $0x20] sm:$0xff] 0.0
        %647 = vst [vmem:[#allocation2 + $0x28] sm:$0x3] 0.0
        %648 = vst [vmem:[#allocation2 + $0x30] sm:$0xff] 0.0
        %649 = vst [vmem:[#allocation2 + $0x38] sm:$0xff] 0.0
        %650 = vst [vmem:[#allocation2 + $0x40] sm:$0x3] 0.0
        %651 = vst [vmem:[#allocation2 + $0x48] sm:$0xff] 0.0
        %652 = vst [vmem:[#allocation2 + $0x50] sm:$0xff] 0.0
        %653 = vst [vmem:[#allocation2 + $0x58] sm:$0x3] 0.0
        %654 = vst [vmem:[#allocation2 + $0x60] sm:$0xff] 0.0
        %655 = vst [vmem:[#allocation2 + $0x68] sm:$0xff] 0.0
        %656 = vst [vmem:[#allocation2 + $0x70] sm:$0x3] 0.0
        %657 = vst [vmem:[#allocation2 + $0x78] sm:$0xff] 0.0
        %658 = vst [vmem:[#allocation2 + $0x80] sm:$0xff] 0.0
        %659 = vst [vmem:[#allocation2 + $0x88] sm:$0x3] 0.0
        %660 = vst [vmem:[#allocation2 + $0x90] sm:$0xff] 0.0
        %661 = vst [vmem:[#allocation2 + $0x98] sm:$0xff] 0.0
        %662 = vst [vmem:[#allocation2 + $0xa0] sm:$0x3] 0.0
        %663 = vst [vmem:[#allocation2 + $0xa8] sm:$0xff] 0.0
        %664 = vst [vmem:[#allocation2 + $0xb0] sm:$0xff] 0.0
        %665 = vst [vmem:[#allocation2 + $0xb8] sm:$0x3] 0.0
        %666 = vst [vmem:[#allocation2 + $0xc0] sm:$0xff] 0.0
        %667 = vst [vmem:[#allocation2 + $0xc8] sm:$0xff] 0.0
        %668 = vst [vmem:[#allocation2 + $0xd0] sm:$0x3] 0.0
        %669 = vst [vmem:[#allocation2 + $0xd8] sm:$0xff] 0.0
        %670 = vst [vmem:[#allocation2 + $0xe0] sm:$0xff] 0.0
        %671 = vst [vmem:[#allocation2 + $0xe8] sm:$0x3] 0.0
        %672 = vst [vmem:[#allocation2 + $0xf0] sm:$0xff] 0.0
        %673 = vst [vmem:[#allocation2 + $0xf8] sm:$0xff] 0.0
        %674 = vst [vmem:[#allocation2 + $0x100] sm:$0x3] 0.0
        %675 = vst [vmem:[#allocation2 + $0x108] sm:$0xff] 0.0
        %676 = vst [vmem:[#allocation2 + $0x110] sm:$0xff] 0.0
        %677 = vst [vmem:[#allocation2 + $0x118] sm:$0x3] 0.0
        %678 = vst [vmem:[#allocation2 + $0x120] sm:$0xff] 0.0
        %679 = vst [vmem:[#allocation2 + $0x128] sm:$0xff] 0.0
        %680 = vst [vmem:[#allocation2 + $0x130] sm:$0x3] 0.0
        %681 = vst [vmem:[#allocation2 + $0x138] sm:$0xff] 0.0
        %682 = vst [vmem:[#allocation2 + $0x140] sm:$0xff] 0.0
        %683 = vst [vmem:[#allocation2 + $0x148] sm:$0x3] 0.0
        %684 = vst [vmem:[#allocation2 + $0x150] sm:$0xff] 0.0
        %685 = vst [vmem:[#allocation2 + $0x158] sm:$0xff] 0.0
        %686 = vst [vmem:[#allocation2 + $0x160] sm:$0x3] 0.0
        %687 = vst [vmem:[#allocation2 + $0x168] sm:$0xff] 0.0
        %688 = vst [vmem:[#allocation2 + $0x170] sm:$0xff] 0.0
        %689 = vst [vmem:[#allocation2 + $0x178] sm:$0x3] 0.0
        %690 = vst [vmem:[#allocation2 + $0x180] sm:$0xff] 0.0
        %691 = vst [vmem:[#allocation2 + $0x188] sm:$0xff] 0.0
        %692 = vst [vmem:[#allocation2 + $0x190] sm:$0x3] 0.0
        %693 = vst [vmem:[#allocation2 + $0x198] sm:$0xff] 0.0
        %694 = vst [vmem:[#allocation2 + $0x1a0] sm:$0xff] 0.0
        %695 = vst [vmem:[#allocation2 + $0x1a8] sm:$0x3] 0.0
        %s696 = scalar_lea.vmem [#allocation2], 24
        %697 = vst [vmem:[%s696 + $0x1] sm:$0xff] %v610
        %698 = vst [vmem:[%s696 + $0x9] sm:$0xff] %v611
        %699 = vst [vmem:[%s696 + $0x19] sm:$0xff] %v612
        %700 = vst [vmem:[%s696 + $0x21] sm:$0xff] %v613
        %701 = vst [vmem:[%s696 + $0x31] sm:$0xff] %v614
        %702 = vst [vmem:[%s696 + $0x39] sm:$0xff] %v615
        %703 = vst [vmem:[%s696 + $0x49] sm:$0xff] %v616
        %704 = vst [vmem:[%s696 + $0x51] sm:$0xff] %v617
        %705 = vst [vmem:[%s696 + $0x61] sm:$0xff] %v618
        %706 = vst [vmem:[%s696 + $0x69] sm:$0xff] %v619
        %707 = vst [vmem:[%s696 + $0x79] sm:$0xff] %v620
        %708 = vst [vmem:[%s696 + $0x81] sm:$0xff] %v621
        %709 = vst [vmem:[%s696 + $0x91] sm:$0xff] %v622
        %710 = vst [vmem:[%s696 + $0x99] sm:$0xff] %v623
        %711 = vst [vmem:[%s696 + $0xa9] sm:$0xff] %v624
        %712 = vst [vmem:[%s696 + $0xb1] sm:$0xff] %v625
        %713 = vst [vmem:[%s696 + $0xc1] sm:$0xff] %v626
        %714 = vst [vmem:[%s696 + $0xc9] sm:$0xff] %v627
        %715 = vst [vmem:[%s696 + $0xd9] sm:$0xff] %v628
        %716 = vst [vmem:[%s696 + $0xe1] sm:$0xff] %v629
        %717 = vst [vmem:[%s696 + $0xf1] sm:$0xff] %v630
        %718 = vst [vmem:[%s696 + $0xf9] sm:$0xff] %v631
        %719 = vst [vmem:[%s696 + $0x109] sm:$0xff] %v632
        %720 = vst [vmem:[%s696 + $0x111] sm:$0xff] %v633
        %721 = vst [vmem:[%s696 + $0x121] sm:$0xff] %v634
        %722 = vst [vmem:[%s696 + $0x129] sm:$0xff] %v635
        %723 = vst [vmem:[%s696 + $0x139] sm:$0xff] %v636
        %724 = vst [vmem:[%s696 + $0x141] sm:$0xff] %v637
        %725 = vst [vmem:[%s696 + $0x151] sm:$0xff] %v638
        %726 = vst [vmem:[%s696 + $0x159] sm:$0xff] %v639
        %727 = vst [vmem:[%s696 + $0x169] sm:$0xff] %v640
        %728 = vst [vmem:[%s696 + $0x171] sm:$0xff] %v641
        %v729 = vld [vmem:[#allocation2] sm:$0xff]
        %v730 = vld [vmem:[#allocation2 + $0x8] sm:$0xff]
        %v731 = vld [vmem:[#allocation2 + $0x10] sm:$0x3]
        %v732 = vld [vmem:[#allocation2 + $0x18] sm:$0xff]
        %v733 = vld [vmem:[#allocation2 + $0x20] sm:$0xff]
        %v734 = vld [vmem:[#allocation2 + $0x28] sm:$0x3]
        %v735 = vld [vmem:[#allocation2 + $0x30] sm:$0xff]
        %v736 = vld [vmem:[#allocation2 + $0x38] sm:$0xff]
        %v737 = vld [vmem:[#allocation2 + $0x40] sm:$0x3]
        %v738 = vld [vmem:[#allocation2 + $0x48] sm:$0xff]
        %v739 = vld [vmem:[#allocation2 + $0x50] sm:$0xff]
        %v740 = vld [vmem:[#allocation2 + $0x58] sm:$0x3]
        %v741 = vld [vmem:[#allocation2 + $0x60] sm:$0xff]
        %v742 = vld [vmem:[#allocation2 + $0x68] sm:$0xff]
        %v743 = vld [vmem:[#allocation2 + $0x70] sm:$0x3]
        %v744 = vld [vmem:[#allocation2 + $0x78] sm:$0xff]
        %v745 = vld [vmem:[#allocation2 + $0x80] sm:$0xff]
        %v746 = vld [vmem:[#allocation2 + $0x88] sm:$0x3]
        %v747 = vld [vmem:[#allocation2 + $0x90] sm:$0xff]
        %v748 = vld [vmem:[#allocation2 + $0x98] sm:$0xff]
        %v749 = vld [vmem:[#allocation2 + $0xa0] sm:$0x3]
        %v750 = vld [vmem:[#allocation2 + $0xa8] sm:$0xff]
        %v751 = vld [vmem:[#allocation2 + $0xb0] sm:$0xff]
        %v752 = vld [vmem:[#allocation2 + $0xb8] sm:$0x3]
        %v753 = vld [vmem:[#allocation2 + $0xc0] sm:$0xff]
        %v754 = vld [vmem:[#allocation2 + $0xc8] sm:$0xff]
        %v755 = vld [vmem:[#allocation2 + $0xd0] sm:$0x3]
        %v756 = vld [vmem:[#allocation2 + $0xd8] sm:$0xff]
        %v757 = vld [vmem:[#allocation2 + $0xe0] sm:$0xff]
        %v758 = vld [vmem:[#allocation2 + $0xe8] sm:$0x3]
        %v759 = vld [vmem:[#allocation2 + $0xf0] sm:$0xff]
        %v760 = vld [vmem:[#allocation2 + $0xf8] sm:$0xff]
        %v761 = vld [vmem:[#allocation2 + $0x100] sm:$0x3]
        %v762 = vld [vmem:[#allocation2 + $0x108] sm:$0xff]
        %v763 = vld [vmem:[#allocation2 + $0x110] sm:$0xff]
        %v764 = vld [vmem:[#allocation2 + $0x118] sm:$0x3]
        %v765 = vld [vmem:[#allocation2 + $0x120] sm:$0xff]
        %v766 = vld [vmem:[#allocation2 + $0x128] sm:$0xff]
        %v767 = vld [vmem:[#allocation2 + $0x130] sm:$0x3]
        %v768 = vld [vmem:[#allocation2 + $0x138] sm:$0xff]
        %v769 = vld [vmem:[#allocation2 + $0x140] sm:$0xff]
        %v770 = vld [vmem:[#allocation2 + $0x148] sm:$0x3]
        %v771 = vld [vmem:[#allocation2 + $0x150] sm:$0xff]
        %v772 = vld [vmem:[#allocation2 + $0x158] sm:$0xff]
        %v773 = vld [vmem:[#allocation2 + $0x160] sm:$0x3]
        %v774 = vld [vmem:[#allocation2 + $0x168] sm:$0xff]
        %v775 = vld [vmem:[#allocation2 + $0x170] sm:$0xff]
        %v776 = vld [vmem:[#allocation2 + $0x178] sm:$0x3]
        %v777 = vld [vmem:[#allocation2 + $0x180] sm:$0xff]
        %v778 = vld [vmem:[#allocation2 + $0x188] sm:$0xff]
        %v779 = vld [vmem:[#allocation2 + $0x190] sm:$0x3]
        %v780 = vld [vmem:[#allocation2 + $0x198] sm:$0xff]
        %v781 = vld [vmem:[#allocation2 + $0x1a0] sm:$0xff]
        %v782 = vld [vmem:[#allocation2 + $0x1a8] sm:$0x3]
        %v783 = vld [vmem:[%s3] sm:$0xff]
        %v784 = vld [vmem:[%s3 + $0x8] sm:$0x1]
        %v785 = vperm.slane %v783, 4
        %v786 = vmul.f32 %v732, %v785
        %v787 = vmul.f32 %v733, %v785
        %v788 = vmul.f32 %v734, %v785
        %v789 = vmul.f32 %v735, %v785
        %v790 = vmul.f32 %v736, %v785
        %v791 = vmul.f32 %v737, %v785
        %v792 = vmul.f32 %v738, %v785
        %v793 = vmul.f32 %v739, %v785
        %v794 = vmul.f32 %v740, %v785
        %v795 = vmul.f32 %v741, %v785
        %v796 = vmul.f32 %v742, %v785
        %v797 = vmul.f32 %v743, %v785
        %v798 = vmul.f32 %v744, %v785
        %v799 = vmul.f32 %v745, %v785
        %v800 = vmul.f32 %v746, %v785
        %v801 = vmul.f32 %v747, %v785
        %v802 = vmul.f32 %v748, %v785
        %v803 = vmul.f32 %v749, %v785
        %v804 = vmul.f32 %v750, %v785
        %v805 = vmul.f32 %v751, %v785
        %v806 = vmul.f32 %v752, %v785
        %v807 = vmul.f32 %v753, %v785
        %v808 = vmul.f32 %v754, %v785
        %v809 = vmul.f32 %v755, %v785
        %v810 = vmul.f32 %v756, %v785
        %v811 = vmul.f32 %v757, %v785
        %v812 = vmul.f32 %v758, %v785
        %v813 = vmul.f32 %v759, %v785
        %v814 = vmul.f32 %v760, %v785
        %v815 = vmul.f32 %v761, %v785
        %v816 = vmul.f32 %v762, %v785
        %v817 = vmul.f32 %v763, %v785
        %v818 = vmul.f32 %v764, %v785
        %v819 = vmul.f32 %v765, %v785
        %v820 = vmul.f32 %v766, %v785
        %v821 = vmul.f32 %v767, %v785
        %v822 = vmul.f32 %v768, %v785
        %v823 = vmul.f32 %v769, %v785
        %v824 = vmul.f32 %v770, %v785
        %v825 = vmul.f32 %v771, %v785
        %v826 = vmul.f32 %v772, %v785
        %v827 = vmul.f32 %v773, %v785
        %v828 = vmul.f32 %v774, %v785
        %v829 = vmul.f32 %v775, %v785
        %v830 = vmul.f32 %v776, %v785
        %v831 = vmul.f32 %v777, %v785
        %v832 = vmul.f32 %v778, %v785
        %v833 = vmul.f32 %v779, %v785
        %v834 = vperm.slane %v783, 0
        %v835 = vmul.f32 %v729, %v834
        %v836 = vmul.f32 %v730, %v834
        %v837 = vmul.f32 %v732, %v834
        %v838 = vmul.f32 %v733, %v834
        %v839 = vmul.f32 %v735, %v834
        %v840 = vmul.f32 %v736, %v834
        %v841 = vmul.f32 %v738, %v834
        %v842 = vmul.f32 %v739, %v834
        %v843 = vmul.f32 %v741, %v834
        %v844 = vmul.f32 %v742, %v834
        %v845 = vmul.f32 %v744, %v834
        %v846 = vmul.f32 %v745, %v834
        %v847 = vmul.f32 %v747, %v834
        %v848 = vmul.f32 %v748, %v834
        %v849 = vmul.f32 %v750, %v834
        %v850 = vmul.f32 %v751, %v834
        %v851 = vmul.f32 %v753, %v834
        %v852 = vmul.f32 %v754, %v834
        %v853 = vmul.f32 %v756, %v834
        %v854 = vmul.f32 %v757, %v834
        %v855 = vmul.f32 %v759, %v834
        %v856 = vmul.f32 %v760, %v834
        %v857 = vmul.f32 %v762, %v834
        %v858 = vmul.f32 %v763, %v834
        %v859 = vmul.f32 %v765, %v834
        %v860 = vmul.f32 %v766, %v834
        %v861 = vmul.f32 %v768, %v834
        %v862 = vmul.f32 %v769, %v834
        %v863 = vmul.f32 %v771, %v834
        %v864 = vmul.f32 %v772, %v834
        %v865 = vmul.f32 %v774, %v834
        %v866 = vmul.f32 %v775, %v834
        %vm899 = vcmask 1040384
        %v900 = vrot.slane %v835, 7
        %v901 = vrot.slane %v836, 7
        %v902 = vsel %vm899, %v900, %v901
        %v903 = vrot.slane %v837, 7
        %v904 = vrot.slane %v838, 7
        %v905 = vsel %vm899, %v903, %v904
        %v906 = vrot.slane %v839, 7
        %v907 = vrot.slane %v840, 7
        %v908 = vsel %vm899, %v906, %v907
        %v909 = vrot.slane %v841, 7
        %v910 = vrot.slane %v842, 7
        %v911 = vsel %vm899, %v909, %v910
        %v912 = vrot.slane %v843, 7
        %v913 = vrot.slane %v844, 7
        %v914 = vsel %vm899, %v912, %v913
        %v915 = vrot.slane %v845, 7
        %v916 = vrot.slane %v846, 7
        %v917 = vsel %vm899, %v915, %v916
        %v918 = vrot.slane %v847, 7
        %v919 = vrot.slane %v848, 7
        %v920 = vsel %vm899, %v918, %v919
        %v921 = vrot.slane %v849, 7
        %v922 = vrot.slane %v850, 7
        %v923 = vsel %vm899, %v921, %v922
        %v924 = vrot.slane %v851, 7
        %v925 = vrot.slane %v852, 7
        %v926 = vsel %vm899, %v924, %v925
        %v927 = vrot.slane %v853, 7
        %v928 = vrot.slane %v854, 7
        %v929 = vsel %vm899, %v927, %v928
        %v930 = vrot.slane %v855, 7
        %v931 = vrot.slane %v856, 7
        %v932 = vsel %vm899, %v930, %v931
        %v933 = vrot.slane %v857, 7
        %v934 = vrot.slane %v858, 7
        %v935 = vsel %vm899, %v933, %v934
        %v936 = vrot.slane %v859, 7
        %v937 = vrot.slane %v860, 7
        %v938 = vsel %vm899, %v936, %v937
        %v939 = vrot.slane %v861, 7
        %v940 = vrot.slane %v862, 7
        %v941 = vsel %vm899, %v939, %v940
        %v942 = vrot.slane %v863, 7
        %v943 = vrot.slane %v864, 7
        %v944 = vsel %vm899, %v942, %v943
        %v945 = vrot.slane %v865, 7
        %v946 = vrot.slane %v866, 7
        %v947 = vsel %vm899, %v945, %v946
        %v996 = vadd.f32 %v786, %v900
        %v997 = vadd.f32 %v787, %v902
        %v998 = vadd.f32 %v788, %v901
        %v999 = vadd.f32 %v789, %v903
        %v1000 = vadd.f32 %v790, %v905
        %v1001 = vadd.f32 %v791, %v904
        %v1002 = vadd.f32 %v792, %v906
        %v1003 = vadd.f32 %v793, %v908
        %v1004 = vadd.f32 %v794, %v907
        %v1005 = vadd.f32 %v795, %v909
        %v1006 = vadd.f32 %v796, %v911
        %v1007 = vadd.f32 %v797, %v910
        %v1008 = vadd.f32 %v798, %v912
        %v1009 = vadd.f32 %v799, %v914
        %v1010 = vadd.f32 %v800, %v913
        %v1011 = vadd.f32 %v801, %v915
        %v1012 = vadd.f32 %v802, %v917
        %v1013 = vadd.f32 %v803, %v916
        %v1014 = vadd.f32 %v804, %v918
        %v1015 = vadd.f32 %v805, %v920
        %v1016 = vadd.f32 %v806, %v919
        %v1017 = vadd.f32 %v807, %v921
        %v1018 = vadd.f32 %v808, %v923
        %v1019 = vadd.f32 %v809, %v922
        %v1020 = vadd.f32 %v810, %v924
        %v1021 = vadd.f32 %v811, %v926
        %v1022 = vadd.f32 %v812, %v925
        %v1023 = vadd.f32 %v813, %v927
        %v1024 = vadd.f32 %v814, %v929
        %v1025 = vadd.f32 %v815, %v928
        %v1026 = vadd.f32 %v816, %v930
        %v1027 = vadd.f32 %v817, %v932
        %v1028 = vadd.f32 %v818, %v931
        %v1029 = vadd.f32 %v819, %v933
        %v1030 = vadd.f32 %v820, %v935
        %v1031 = vadd.f32 %v821, %v934
        %v1032 = vadd.f32 %v822, %v936
        %v1033 = vadd.f32 %v823, %v938
        %v1034 = vadd.f32 %v824, %v937
        %v1035 = vadd.f32 %v825, %v939
        %v1036 = vadd.f32 %v826, %v941
        %v1037 = vadd.f32 %v827, %v940
        %v1038 = vadd.f32 %v828, %v942
        %v1039 = vadd.f32 %v829, %v944
        %v1040 = vadd.f32 %v830, %v943
        %v1041 = vadd.f32 %v831, %v945
        %v1042 = vadd.f32 %v832, %v947
        %v1043 = vadd.f32 %v833, %v946
        %v1044 = vperm.slane %v783, 1
        %v1045 = vmul.f32 %v729, %v1044
        %v1046 = vmul.f32 %v730, %v1044
        %v1047 = vmul.f32 %v731, %v1044
        %v1048 = vmul.f32 %v732, %v1044
        %v1049 = vmul.f32 %v733, %v1044
        %v1050 = vmul.f32 %v734, %v1044
        %v1051 = vmul.f32 %v735, %v1044
        %v1052 = vmul.f32 %v736, %v1044
        %v1053 = vmul.f32 %v737, %v1044
        %v1054 = vmul.f32 %v738, %v1044
        %v1055 = vmul.f32 %v739, %v1044
        %v1056 = vmul.f32 %v740, %v1044
        %v1057 = vmul.f32 %v741, %v1044
        %v1058 = vmul.f32 %v742, %v1044
        %v1059 = vmul.f32 %v743, %v1044
        %v1060 = vmul.f32 %v744, %v1044
        %v1061 = vmul.f32 %v745, %v1044
        %v1062 = vmul.f32 %v746, %v1044
        %v1063 = vmul.f32 %v747, %v1044
        %v1064 = vmul.f32 %v748, %v1044
        %v1065 = vmul.f32 %v749, %v1044
        %v1066 = vmul.f32 %v750, %v1044
        %v1067 = vmul.f32 %v751, %v1044
        %v1068 = vmul.f32 %v752, %v1044
        %v1069 = vmul.f32 %v753, %v1044
        %v1070 = vmul.f32 %v754, %v1044
        %v1071 = vmul.f32 %v755, %v1044
        %v1072 = vmul.f32 %v756, %v1044
        %v1073 = vmul.f32 %v757, %v1044
        %v1074 = vmul.f32 %v758, %v1044
        %v1075 = vmul.f32 %v759, %v1044
        %v1076 = vmul.f32 %v760, %v1044
        %v1077 = vmul.f32 %v761, %v1044
        %v1078 = vmul.f32 %v762, %v1044
        %v1079 = vmul.f32 %v763, %v1044
        %v1080 = vmul.f32 %v764, %v1044
        %v1081 = vmul.f32 %v765, %v1044
        %v1082 = vmul.f32 %v766, %v1044
        %v1083 = vmul.f32 %v767, %v1044
        %v1084 = vmul.f32 %v768, %v1044
        %v1085 = vmul.f32 %v769, %v1044
        %v1086 = vmul.f32 %v770, %v1044
        %v1087 = vmul.f32 %v771, %v1044
        %v1088 = vmul.f32 %v772, %v1044
        %v1089 = vmul.f32 %v773, %v1044
        %v1090 = vmul.f32 %v774, %v1044
        %v1091 = vmul.f32 %v775, %v1044
        %v1092 = vmul.f32 %v776, %v1044
        %v1093 = vadd.f32 %v996, %v1045
        %v1094 = vadd.f32 %v997, %v1046
        %v1095 = vadd.f32 %v998, %v1047
        %v1096 = vadd.f32 %v999, %v1048
        %v1097 = vadd.f32 %v1000, %v1049
        %v1098 = vadd.f32 %v1001, %v1050
        %v1099 = vadd.f32 %v1002, %v1051
        %v1100 = vadd.f32 %v1003, %v1052
        %v1101 = vadd.f32 %v1004, %v1053
        %v1102 = vadd.f32 %v1005, %v1054
        %v1103 = vadd.f32 %v1006, %v1055
        %v1104 = vadd.f32 %v1007, %v1056
        %v1105 = vadd.f32 %v1008, %v1057
        %v1106 = vadd.f32 %v1009, %v1058
        %v1107 = vadd.f32 %v1010, %v1059
        %v1108 = vadd.f32 %v1011, %v1060
        %v1109 = vadd.f32 %v1012, %v1061
        %v1110 = vadd.f32 %v1013, %v1062
        %v1111 = vadd.f32 %v1014, %v1063
        %v1112 = vadd.f32 %v1015, %v1064
        %v1113 = vadd.f32 %v1016, %v1065
        %v1114 = vadd.f32 %v1017, %v1066
        %v1115 = vadd.f32 %v1018, %v1067
        %v1116 = vadd.f32 %v1019, %v1068
        %v1117 = vadd.f32 %v1020, %v1069
        %v1118 = vadd.f32 %v1021, %v1070
        %v1119 = vadd.f32 %v1022, %v1071
        %v1120 = vadd.f32 %v1023, %v1072
        %v1121 = vadd.f32 %v1024, %v1073
        %v1122 = vadd.f32 %v1025, %v1074
        %v1123 = vadd.f32 %v1026, %v1075
        %v1124 = vadd.f32 %v1027, %v1076
        %v1125 = vadd.f32 %v1028, %v1077
        %v1126 = vadd.f32 %v1029, %v1078
        %v1127 = vadd.f32 %v1030, %v1079
        %v1128 = vadd.f32 %v1031, %v1080
        %v1129 = vadd.f32 %v1032, %v1081
        %v1130 = vadd.f32 %v1033, %v1082
        %v1131 = vadd.f32 %v1034, %v1083
        %v1132 = vadd.f32 %v1035, %v1084
        %v1133 = vadd.f32 %v1036, %v1085
        %v1134 = vadd.f32 %v1037, %v1086
        %v1135 = vadd.f32 %v1038, %v1087
        %v1136 = vadd.f32 %v1039, %v1088
        %v1137 = vadd.f32 %v1040, %v1089
        %v1138 = vadd.f32 %v1041, %v1090
        %v1139 = vadd.f32 %v1042, %v1091
        %v1140 = vadd.f32 %v1043, %v1092
        %v1141 = vperm.slane %v783, 2
        %v1142 = vmul.f32 %v729, %v1141
        %v1143 = vmul.f32 %v730, %v1141
        %v1144 = vmul.f32 %v731, %v1141
        %v1145 = vmul.f32 %v732, %v1141
        %v1146 = vmul.f32 %v733, %v1141
        %v1147 = vmul.f32 %v734, %v1141
        %v1148 = vmul.f32 %v735, %v1141
        %v1149 = vmul.f32 %v736, %v1141
        %v1150 = vmul.f32 %v737, %v1141
        %v1151 = vmul.f32 %v738, %v1141
        %v1152 = vmul.f32 %v739, %v1141
        %v1153 = vmul.f32 %v740, %v1141
        %v1154 = vmul.f32 %v741, %v1141
        %v1155 = vmul.f32 %v742, %v1141
        %v1156 = vmul.f32 %v743, %v1141
        %v1157 = vmul.f32 %v744, %v1141
        %v1158 = vmul.f32 %v745, %v1141
        %v1159 = vmul.f32 %v746, %v1141
        %v1160 = vmul.f32 %v747, %v1141
        %v1161 = vmul.f32 %v748, %v1141
        %v1162 = vmul.f32 %v749, %v1141
        %v1163 = vmul.f32 %v750, %v1141
        %v1164 = vmul.f32 %v751, %v1141
        %v1165 = vmul.f32 %v752, %v1141
        %v1166 = vmul.f32 %v753, %v1141
        %v1167 = vmul.f32 %v754, %v1141
        %v1168 = vmul.f32 %v755, %v1141
        %v1169 = vmul.f32 %v756, %v1141
        %v1170 = vmul.f32 %v757, %v1141
        %v1171 = vmul.f32 %v758, %v1141
        %v1172 = vmul.f32 %v759, %v1141
        %v1173 = vmul.f32 %v760, %v1141
        %v1174 = vmul.f32 %v761, %v1141
        %v1175 = vmul.f32 %v762, %v1141
        %v1176 = vmul.f32 %v763, %v1141
        %v1177 = vmul.f32 %v764, %v1141
        %v1178 = vmul.f32 %v765, %v1141
        %v1179 = vmul.f32 %v766, %v1141
        %v1180 = vmul.f32 %v767, %v1141
        %v1181 = vmul.f32 %v768, %v1141
        %v1182 = vmul.f32 %v769, %v1141
        %v1183 = vmul.f32 %v770, %v1141
        %v1184 = vmul.f32 %v771, %v1141
        %v1185 = vmul.f32 %v772, %v1141
        %v1186 = vmul.f32 %v773, %v1141
        %v1187 = vmul.f32 %v774, %v1141
        %v1188 = vmul.f32 %v775, %v1141
        %v1189 = vmul.f32 %v776, %v1141
        %vm1238 = vcmask 1046528
        %v1239 = vrot.slane %v1142, 1
        %v1240 = vrot.slane %v1143, 1
        %v1241 = vsel %vm1238, %v1239, %v1240
        %v1242 = vrot.slane %v1144, 1
        %v1243 = vsel %vm1238, %v1240, %v1242
        %v1244 = vrot.slane %v1145, 1
        %v1245 = vrot.slane %v1146, 1
        %v1246 = vsel %vm1238, %v1244, %v1245
        %v1247 = vrot.slane %v1147, 1
        %v1248 = vsel %vm1238, %v1245, %v1247
        %v1249 = vrot.slane %v1148, 1
        %v1250 = vrot.slane %v1149, 1
        %v1251 = vsel %vm1238, %v1249, %v1250
        %v1252 = vrot.slane %v1150, 1
        %v1253 = vsel %vm1238, %v1250, %v1252
        %v1254 = vrot.slane %v1151, 1
        %v1255 = vrot.slane %v1152, 1
        %v1256 = vsel %vm1238, %v1254, %v1255
        %v1257 = vrot.slane %v1153, 1
        %v1258 = vsel %vm1238, %v1255, %v1257
        %v1259 = vrot.slane %v1154, 1
        %v1260 = vrot.slane %v1155, 1
        %v1261 = vsel %vm1238, %v1259, %v1260
        %v1262 = vrot.slane %v1156, 1
        %v1263 = vsel %vm1238, %v1260, %v1262
        %v1264 = vrot.slane %v1157, 1
        %v1265 = vrot.slane %v1158, 1
        %v1266 = vsel %vm1238, %v1264, %v1265
        %v1267 = vrot.slane %v1159, 1
        %v1268 = vsel %vm1238, %v1265, %v1267
        %v1269 = vrot.slane %v1160, 1
        %v1270 = vrot.slane %v1161, 1
        %v1271 = vsel %vm1238, %v1269, %v1270
        %v1272 = vrot.slane %v1162, 1
        %v1273 = vsel %vm1238, %v1270, %v1272
        %v1274 = vrot.slane %v1163, 1
        %v1275 = vrot.slane %v1164, 1
        %v1276 = vsel %vm1238, %v1274, %v1275
        %v1277 = vrot.slane %v1165, 1
        %v1278 = vsel %vm1238, %v1275, %v1277
        %v1279 = vrot.slane %v1166, 1
        %v1280 = vrot.slane %v1167, 1
        %v1281 = vsel %vm1238, %v1279, %v1280
        %v1282 = vrot.slane %v1168, 1
        %v1283 = vsel %vm1238, %v1280, %v1282
        %v1284 = vrot.slane %v1169, 1
        %v1285 = vrot.slane %v1170, 1
        %v1286 = vsel %vm1238, %v1284, %v1285
        %v1287 = vrot.slane %v1171, 1
        %v1288 = vsel %vm1238, %v1285, %v1287
        %v1289 = vrot.slane %v1172, 1
        %v1290 = vrot.slane %v1173, 1
        %v1291 = vsel %vm1238, %v1289, %v1290
        %v1292 = vrot.slane %v1174, 1
        %v1293 = vsel %vm1238, %v1290, %v1292
        %v1294 = vrot.slane %v1175, 1
        %v1295 = vrot.slane %v1176, 1
        %v1296 = vsel %vm1238, %v1294, %v1295
        %v1297 = vrot.slane %v1177, 1
        %v1298 = vsel %vm1238, %v1295, %v1297
        %v1299 = vrot.slane %v1178, 1
        %v1300 = vrot.slane %v1179, 1
        %v1301 = vsel %vm1238, %v1299, %v1300
        %v1302 = vrot.slane %v1180, 1
        %v1303 = vsel %vm1238, %v1300, %v1302
        %v1304 = vrot.slane %v1181, 1
        %v1305 = vrot.slane %v1182, 1
        %v1306 = vsel %vm1238, %v1304, %v1305
        %v1307 = vrot.slane %v1183, 1
        %v1308 = vsel %vm1238, %v1305, %v1307
        %v1309 = vrot.slane %v1184, 1
        %v1310 = vrot.slane %v1185, 1
        %v1311 = vsel %vm1238, %v1309, %v1310
        %v1312 = vrot.slane %v1186, 1
        %v1313 = vsel %vm1238, %v1310, %v1312
        %v1314 = vrot.slane %v1187, 1
        %v1315 = vrot.slane %v1188, 1
        %v1316 = vsel %vm1238, %v1314, %v1315
        %v1317 = vrot.slane %v1189, 1
        %v1318 = vsel %vm1238, %v1315, %v1317
        %v1367 = vadd.f32 %v1093, %v1241
        %v1368 = vadd.f32 %v1094, %v1243
        %v1369 = vadd.f32 %v1095, %v1242
        %v1370 = vadd.f32 %v1096, %v1246
        %v1371 = vadd.f32 %v1097, %v1248
        %v1372 = vadd.f32 %v1098, %v1247
        %v1373 = vadd.f32 %v1099, %v1251
        %v1374 = vadd.f32 %v1100, %v1253
        %v1375 = vadd.f32 %v1101, %v1252
        %v1376 = vadd.f32 %v1102, %v1256
        %v1377 = vadd.f32 %v1103, %v1258
        %v1378 = vadd.f32 %v1104, %v1257
        %v1379 = vadd.f32 %v1105, %v1261
        %v1380 = vadd.f32 %v1106, %v1263
        %v1381 = vadd.f32 %v1107, %v1262
        %v1382 = vadd.f32 %v1108, %v1266
        %v1383 = vadd.f32 %v1109, %v1268
        %v1384 = vadd.f32 %v1110, %v1267
        %v1385 = vadd.f32 %v1111, %v1271
        %v1386 = vadd.f32 %v1112, %v1273
        %v1387 = vadd.f32 %v1113, %v1272
        %v1388 = vadd.f32 %v1114, %v1276
        %v1389 = vadd.f32 %v1115, %v1278
        %v1390 = vadd.f32 %v1116, %v1277
        %v1391 = vadd.f32 %v1117, %v1281
        %v1392 = vadd.f32 %v1118, %v1283
        %v1393 = vadd.f32 %v1119, %v1282
        %v1394 = vadd.f32 %v1120, %v1286
        %v1395 = vadd.f32 %v1121, %v1288
        %v1396 = vadd.f32 %v1122, %v1287
        %v1397 = vadd.f32 %v1123, %v1291
        %v1398 = vadd.f32 %v1124, %v1293
        %v1399 = vadd.f32 %v1125, %v1292
        %v1400 = vadd.f32 %v1126, %v1296
        %v1401 = vadd.f32 %v1127, %v1298
        %v1402 = vadd.f32 %v1128, %v1297
        %v1403 = vadd.f32 %v1129, %v1301
        %v1404 = vadd.f32 %v1130, %v1303
        %v1405 = vadd.f32 %v1131, %v1302
        %v1406 = vadd.f32 %v1132, %v1306
        %v1407 = vadd.f32 %v1133, %v1308
        %v1408 = vadd.f32 %v1134, %v1307
        %v1409 = vadd.f32 %v1135, %v1311
        %v1410 = vadd.f32 %v1136, %v1313
        %v1411 = vadd.f32 %v1137, %v1312
        %v1412 = vadd.f32 %v1138, %v1316
        %v1413 = vadd.f32 %v1139, %v1318
        %v1414 = vadd.f32 %v1140, %v1317
        %v1415 = vperm.slane %v783, 3
        %v1416 = vmul.f32 %v732, %v1415
        %v1417 = vmul.f32 %v733, %v1415
        %v1418 = vmul.f32 %v735, %v1415
        %v1419 = vmul.f32 %v736, %v1415
        %v1420 = vmul.f32 %v738, %v1415
        %v1421 = vmul.f32 %v739, %v1415
        %v1422 = vmul.f32 %v741, %v1415
        %v1423 = vmul.f32 %v742, %v1415
        %v1424 = vmul.f32 %v744, %v1415
        %v1425 = vmul.f32 %v745, %v1415
        %v1426 = vmul.f32 %v747, %v1415
        %v1427 = vmul.f32 %v748, %v1415
        %v1428 = vmul.f32 %v750, %v1415
        %v1429 = vmul.f32 %v751, %v1415
        %v1430 = vmul.f32 %v753, %v1415
        %v1431 = vmul.f32 %v754, %v1415
        %v1432 = vmul.f32 %v756, %v1415
        %v1433 = vmul.f32 %v757, %v1415
        %v1434 = vmul.f32 %v759, %v1415
        %v1435 = vmul.f32 %v760, %v1415
        %v1436 = vmul.f32 %v762, %v1415
        %v1437 = vmul.f32 %v763, %v1415
        %v1438 = vmul.f32 %v765, %v1415
        %v1439 = vmul.f32 %v766, %v1415
        %v1440 = vmul.f32 %v768, %v1415
        %v1441 = vmul.f32 %v769, %v1415
        %v1442 = vmul.f32 %v771, %v1415
        %v1443 = vmul.f32 %v772, %v1415
        %v1444 = vmul.f32 %v774, %v1415
        %v1445 = vmul.f32 %v775, %v1415
        %v1446 = vmul.f32 %v777, %v1415
        %v1447 = vmul.f32 %v778, %v1415
        %v1480 = vrot.slane %v1416, 7
        %v1481 = vrot.slane %v1417, 7
        %v1482 = vsel %vm899, %v1480, %v1481
        %v1483 = vrot.slane %v1418, 7
        %v1484 = vrot.slane %v1419, 7
        %v1485 = vsel %vm899, %v1483, %v1484
        %v1486 = vrot.slane %v1420, 7
        %v1487 = vrot.slane %v1421, 7
        %v1488 = vsel %vm899, %v1486, %v1487
        %v1489 = vrot.slane %v1422, 7
        %v1490 = vrot.slane %v1423, 7
        %v1491 = vsel %vm899, %v1489, %v1490
        %v1492 = vrot.slane %v1424, 7
        %v1493 = vrot.slane %v1425, 7
        %v1494 = vsel %vm899, %v1492, %v1493
        %v1495 = vrot.slane %v1426, 7
        %v1496 = vrot.slane %v1427, 7
        %v1497 = vsel %vm899, %v1495, %v1496
        %v1498 = vrot.slane %v1428, 7
        %v1499 = vrot.slane %v1429, 7
        %v1500 = vsel %vm899, %v1498, %v1499
        %v1501 = vrot.slane %v1430, 7
        %v1502 = vrot.slane %v1431, 7
        %v1503 = vsel %vm899, %v1501, %v1502
        %v1504 = vrot.slane %v1432, 7
        %v1505 = vrot.slane %v1433, 7
        %v1506 = vsel %vm899, %v1504, %v1505
        %v1507 = vrot.slane %v1434, 7
        %v1508 = vrot.slane %v1435, 7
        %v1509 = vsel %vm899, %v1507, %v1508
        %v1510 = vrot.slane %v1436, 7
        %v1511 = vrot.slane %v1437, 7
        %v1512 = vsel %vm899, %v1510, %v1511
        %v1513 = vrot.slane %v1438, 7
        %v1514 = vrot.slane %v1439, 7
        %v1515 = vsel %vm899, %v1513, %v1514
        %v1516 = vrot.slane %v1440, 7
        %v1517 = vrot.slane %v1441, 7
        %v1518 = vsel %vm899, %v1516, %v1517
        %v1519 = vrot.slane %v1442, 7
        %v1520 = vrot.slane %v1443, 7
        %v1521 = vsel %vm899, %v1519, %v1520
        %v1522 = vrot.slane %v1444, 7
        %v1523 = vrot.slane %v1445, 7
        %v1524 = vsel %vm899, %v1522, %v1523
        %v1525 = vrot.slane %v1446, 7
        %v1526 = vrot.slane %v1447, 7
        %v1527 = vsel %vm899, %v1525, %v1526
        %v1576 = vadd.f32 %v1367, %v1480
        %v1577 = vadd.f32 %v1368, %v1482
        %v1578 = vadd.f32 %v1369, %v1481
        %v1579 = vadd.f32 %v1370, %v1483
        %v1580 = vadd.f32 %v1371, %v1485
        %v1581 = vadd.f32 %v1372, %v1484
        %v1582 = vadd.f32 %v1373, %v1486
        %v1583 = vadd.f32 %v1374, %v1488
        %v1584 = vadd.f32 %v1375, %v1487
        %v1585 = vadd.f32 %v1376, %v1489
        %v1586 = vadd.f32 %v1377, %v1491
        %v1587 = vadd.f32 %v1378, %v1490
        %v1588 = vadd.f32 %v1379, %v1492
        %v1589 = vadd.f32 %v1380, %v1494
        %v1590 = vadd.f32 %v1381, %v1493
        %v1591 = vadd.f32 %v1382, %v1495
        %v1592 = vadd.f32 %v1383, %v1497
        %v1593 = vadd.f32 %v1384, %v1496
        %v1594 = vadd.f32 %v1385, %v1498
        %v1595 = vadd.f32 %v1386, %v1500
        %v1596 = vadd.f32 %v1387, %v1499
        %v1597 = vadd.f32 %v1388, %v1501
        %v1598 = vadd.f32 %v1389, %v1503
        %v1599 = vadd.f32 %v1390, %v1502
        %v1600 = vadd.f32 %v1391, %v1504
        %v1601 = vadd.f32 %v1392, %v1506
        %v1602 = vadd.f32 %v1393, %v1505
        %v1603 = vadd.f32 %v1394, %v1507
        %v1604 = vadd.f32 %v1395, %v1509
        %v1605 = vadd.f32 %v1396, %v1508
        %v1606 = vadd.f32 %v1397, %v1510
        %v1607 = vadd.f32 %v1398, %v1512
        %v1608 = vadd.f32 %v1399, %v1511
        %v1609 = vadd.f32 %v1400, %v1513
        %v1610 = vadd.f32 %v1401, %v1515
        %v1611 = vadd.f32 %v1402, %v1514
        %v1612 = vadd.f32 %v1403, %v1516
        %v1613 = vadd.f32 %v1404, %v1518
        %v1614 = vadd.f32 %v1405, %v1517
        %v1615 = vadd.f32 %v1406, %v1519
        %v1616 = vadd.f32 %v1407, %v1521
        %v1617 = vadd.f32 %v1408, %v1520
        %v1618 = vadd.f32 %v1409, %v1522
        %v1619 = vadd.f32 %v1410, %v1524
        %v1620 = vadd.f32 %v1411, %v1523
        %v1621 = vadd.f32 %v1412, %v1525
        %v1622 = vadd.f32 %v1413, %v1527
        %v1623 = vadd.f32 %v1414, %v1526
        %v1624 = vperm.slane %v783, 5
        %v1625 = vmul.f32 %v732, %v1624
        %v1626 = vmul.f32 %v733, %v1624
        %v1627 = vmul.f32 %v734, %v1624
        %v1628 = vmul.f32 %v735, %v1624
        %v1629 = vmul.f32 %v736, %v1624
        %v1630 = vmul.f32 %v737, %v1624
        %v1631 = vmul.f32 %v738, %v1624
        %v1632 = vmul.f32 %v739, %v1624
        %v1633 = vmul.f32 %v740, %v1624
        %v1634 = vmul.f32 %v741, %v1624
        %v1635 = vmul.f32 %v742, %v1624
        %v1636 = vmul.f32 %v743, %v1624
        %v1637 = vmul.f32 %v744, %v1624
        %v1638 = vmul.f32 %v745, %v1624
        %v1639 = vmul.f32 %v746, %v1624
        %v1640 = vmul.f32 %v747, %v1624
        %v1641 = vmul.f32 %v748, %v1624
        %v1642 = vmul.f32 %v749, %v1624
        %v1643 = vmul.f32 %v750, %v1624
        %v1644 = vmul.f32 %v751, %v1624
        %v1645 = vmul.f32 %v752, %v1624
        %v1646 = vmul.f32 %v753, %v1624
        %v1647 = vmul.f32 %v754, %v1624
        %v1648 = vmul.f32 %v755, %v1624
        %v1649 = vmul.f32 %v756, %v1624
        %v1650 = vmul.f32 %v757, %v1624
        %v1651 = vmul.f32 %v758, %v1624
        %v1652 = vmul.f32 %v759, %v1624
        %v1653 = vmul.f32 %v760, %v1624
        %v1654 = vmul.f32 %v761, %v1624
        %v1655 = vmul.f32 %v762, %v1624
        %v1656 = vmul.f32 %v763, %v1624
        %v1657 = vmul.f32 %v764, %v1624
        %v1658 = vmul.f32 %v765, %v1624
        %v1659 = vmul.f32 %v766, %v1624
        %v1660 = vmul.f32 %v767, %v1624
        %v1661 = vmul.f32 %v768, %v1624
        %v1662 = vmul.f32 %v769, %v1624
        %v1663 = vmul.f32 %v770, %v1624
        %v1664 = vmul.f32 %v771, %v1624
        %v1665 = vmul.f32 %v772, %v1624
        %v1666 = vmul.f32 %v773, %v1624
        %v1667 = vmul.f32 %v774, %v1624
        %v1668 = vmul.f32 %v775, %v1624
        %v1669 = vmul.f32 %v776, %v1624
        %v1670 = vmul.f32 %v777, %v1624
        %v1671 = vmul.f32 %v778, %v1624
        %v1672 = vmul.f32 %v779, %v1624
        %v1721 = vrot.slane %v1625, 1
        %v1722 = vrot.slane %v1626, 1
        %v1723 = vsel %vm1238, %v1721, %v1722
        %v1724 = vrot.slane %v1627, 1
        %v1725 = vsel %vm1238, %v1722, %v1724
        %v1726 = vrot.slane %v1628, 1
        %v1727 = vrot.slane %v1629, 1
        %v1728 = vsel %vm1238, %v1726, %v1727
        %v1729 = vrot.slane %v1630, 1
        %v1730 = vsel %vm1238, %v1727, %v1729
        %v1731 = vrot.slane %v1631, 1
        %v1732 = vrot.slane %v1632, 1
        %v1733 = vsel %vm1238, %v1731, %v1732
        %v1734 = vrot.slane %v1633, 1
        %v1735 = vsel %vm1238, %v1732, %v1734
        %v1736 = vrot.slane %v1634, 1
        %v1737 = vrot.slane %v1635, 1
        %v1738 = vsel %vm1238, %v1736, %v1737
        %v1739 = vrot.slane %v1636, 1
        %v1740 = vsel %vm1238, %v1737, %v1739
        %v1741 = vrot.slane %v1637, 1
        %v1742 = vrot.slane %v1638, 1
        %v1743 = vsel %vm1238, %v1741, %v1742
        %v1744 = vrot.slane %v1639, 1
        %v1745 = vsel %vm1238, %v1742, %v1744
        %v1746 = vrot.slane %v1640, 1
        %v1747 = vrot.slane %v1641, 1
        %v1748 = vsel %vm1238, %v1746, %v1747
        %v1749 = vrot.slane %v1642, 1
        %v1750 = vsel %vm1238, %v1747, %v1749
        %v1751 = vrot.slane %v1643, 1
        %v1752 = vrot.slane %v1644, 1
        %v1753 = vsel %vm1238, %v1751, %v1752
        %v1754 = vrot.slane %v1645, 1
        %v1755 = vsel %vm1238, %v1752, %v1754
        %v1756 = vrot.slane %v1646, 1
        %v1757 = vrot.slane %v1647, 1
        %v1758 = vsel %vm1238, %v1756, %v1757
        %v1759 = vrot.slane %v1648, 1
        %v1760 = vsel %vm1238, %v1757, %v1759
        %v1761 = vrot.slane %v1649, 1
        %v1762 = vrot.slane %v1650, 1
        %v1763 = vsel %vm1238, %v1761, %v1762
        %v1764 = vrot.slane %v1651, 1
        %v1765 = vsel %vm1238, %v1762, %v1764
        %v1766 = vrot.slane %v1652, 1
        %v1767 = vrot.slane %v1653, 1
        %v1768 = vsel %vm1238, %v1766, %v1767
        %v1769 = vrot.slane %v1654, 1
        %v1770 = vsel %vm1238, %v1767, %v1769
        %v1771 = vrot.slane %v1655, 1
        %v1772 = vrot.slane %v1656, 1
        %v1773 = vsel %vm1238, %v1771, %v1772
        %v1774 = vrot.slane %v1657, 1
        %v1775 = vsel %vm1238, %v1772, %v1774
        %v1776 = vrot.slane %v1658, 1
        %v1777 = vrot.slane %v1659, 1
        %v1778 = vsel %vm1238, %v1776, %v1777
        %v1779 = vrot.slane %v1660, 1
        %v1780 = vsel %vm1238, %v1777, %v1779
        %v1781 = vrot.slane %v1661, 1
        %v1782 = vrot.slane %v1662, 1
        %v1783 = vsel %vm1238, %v1781, %v1782
        %v1784 = vrot.slane %v1663, 1
        %v1785 = vsel %vm1238, %v1782, %v1784
        %v1786 = vrot.slane %v1664, 1
        %v1787 = vrot.slane %v1665, 1
        %v1788 = vsel %vm1238, %v1786, %v1787
        %v1789 = vrot.slane %v1666, 1
        %v1790 = vsel %vm1238, %v1787, %v1789
        %v1791 = vrot.slane %v1667, 1
        %v1792 = vrot.slane %v1668, 1
        %v1793 = vsel %vm1238, %v1791, %v1792
        %v1794 = vrot.slane %v1669, 1
        %v1795 = vsel %vm1238, %v1792, %v1794
        %v1796 = vrot.slane %v1670, 1
        %v1797 = vrot.slane %v1671, 1
        %v1798 = vsel %vm1238, %v1796, %v1797
        %v1799 = vrot.slane %v1672, 1
        %v1800 = vsel %vm1238, %v1797, %v1799
        %v1849 = vadd.f32 %v1576, %v1723
        %v1850 = vadd.f32 %v1577, %v1725
        %v1851 = vadd.f32 %v1578, %v1724
        %v1852 = vadd.f32 %v1579, %v1728
        %v1853 = vadd.f32 %v1580, %v1730
        %v1854 = vadd.f32 %v1581, %v1729
        %v1855 = vadd.f32 %v1582, %v1733
        %v1856 = vadd.f32 %v1583, %v1735
        %v1857 = vadd.f32 %v1584, %v1734
        %v1858 = vadd.f32 %v1585, %v1738
        %v1859 = vadd.f32 %v1586, %v1740
        %v1860 = vadd.f32 %v1587, %v1739
        %v1861 = vadd.f32 %v1588, %v1743
        %v1862 = vadd.f32 %v1589, %v1745
        %v1863 = vadd.f32 %v1590, %v1744
        %v1864 = vadd.f32 %v1591, %v1748
        %v1865 = vadd.f32 %v1592, %v1750
        %v1866 = vadd.f32 %v1593, %v1749
        %v1867 = vadd.f32 %v1594, %v1753
        %v1868 = vadd.f32 %v1595, %v1755
        %v1869 = vadd.f32 %v1596, %v1754
        %v1870 = vadd.f32 %v1597, %v1758
        %v1871 = vadd.f32 %v1598, %v1760
        %v1872 = vadd.f32 %v1599, %v1759
        %v1873 = vadd.f32 %v1600, %v1763
        %v1874 = vadd.f32 %v1601, %v1765
        %v1875 = vadd.f32 %v1602, %v1764
        %v1876 = vadd.f32 %v1603, %v1768
        %v1877 = vadd.f32 %v1604, %v1770
        %v1878 = vadd.f32 %v1605, %v1769
        %v1879 = vadd.f32 %v1606, %v1773
        %v1880 = vadd.f32 %v1607, %v1775
        %v1881 = vadd.f32 %v1608, %v1774
        %v1882 = vadd.f32 %v1609, %v1778
        %v1883 = vadd.f32 %v1610, %v1780
        %v1884 = vadd.f32 %v1611, %v1779
        %v1885 = vadd.f32 %v1612, %v1783
        %v1886 = vadd.f32 %v1613, %v1785
        %v1887 = vadd.f32 %v1614, %v1784
        %v1888 = vadd.f32 %v1615, %v1788
        %v1889 = vadd.f32 %v1616, %v1790
        %v1890 = vadd.f32 %v1617, %v1789
        %v1891 = vadd.f32 %v1618, %v1793
        %v1892 = vadd.f32 %v1619, %v1795
        %v1893 = vadd.f32 %v1620, %v1794
        %v1894 = vadd.f32 %v1621, %v1798
        %v1895 = vadd.f32 %v1622, %v1800
        %v1896 = vadd.f32 %v1623, %v1799
        %v1897 = vperm.slane %v783, 6
        %v1898 = vmul.f32 %v735, %v1897
        %v1899 = vmul.f32 %v736, %v1897
        %v1900 = vmul.f32 %v738, %v1897
        %v1901 = vmul.f32 %v739, %v1897
        %v1902 = vmul.f32 %v741, %v1897
        %v1903 = vmul.f32 %v742, %v1897
        %v1904 = vmul.f32 %v744, %v1897
        %v1905 = vmul.f32 %v745, %v1897
        %v1906 = vmul.f32 %v747, %v1897
        %v1907 = vmul.f32 %v748, %v1897
        %v1908 = vmul.f32 %v750, %v1897
        %v1909 = vmul.f32 %v751, %v1897
        %v1910 = vmul.f32 %v753, %v1897
        %v1911 = vmul.f32 %v754, %v1897
        %v1912 = vmul.f32 %v756, %v1897
        %v1913 = vmul.f32 %v757, %v1897
        %v1914 = vmul.f32 %v759, %v1897
        %v1915 = vmul.f32 %v760, %v1897
        %v1916 = vmul.f32 %v762, %v1897
        %v1917 = vmul.f32 %v763, %v1897
        %v1918 = vmul.f32 %v765, %v1897
        %v1919 = vmul.f32 %v766, %v1897
        %v1920 = vmul.f32 %v768, %v1897
        %v1921 = vmul.f32 %v769, %v1897
        %v1922 = vmul.f32 %v771, %v1897
        %v1923 = vmul.f32 %v772, %v1897
        %v1924 = vmul.f32 %v774, %v1897
        %v1925 = vmul.f32 %v775, %v1897
        %v1926 = vmul.f32 %v777, %v1897
        %v1927 = vmul.f32 %v778, %v1897
        %v1928 = vmul.f32 %v780, %v1897
        %v1929 = vmul.f32 %v781, %v1897
        %v1962 = vrot.slane %v1898, 7
        %v1963 = vrot.slane %v1899, 7
        %v1964 = vsel %vm899, %v1962, %v1963
        %v1965 = vrot.slane %v1900, 7
        %v1966 = vrot.slane %v1901, 7
        %v1967 = vsel %vm899, %v1965, %v1966
        %v1968 = vrot.slane %v1902, 7
        %v1969 = vrot.slane %v1903, 7
        %v1970 = vsel %vm899, %v1968, %v1969
        %v1971 = vrot.slane %v1904, 7
        %v1972 = vrot.slane %v1905, 7
        %v1973 = vsel %vm899, %v1971, %v1972
        %v1974 = vrot.slane %v1906, 7
        %v1975 = vrot.slane %v1907, 7
        %v1976 = vsel %vm899, %v1974, %v1975
        %v1977 = vrot.slane %v1908, 7
        %v1978 = vrot.slane %v1909, 7
        %v1979 = vsel %vm899, %v1977, %v1978
        %v1980 = vrot.slane %v1910, 7
        %v1981 = vrot.slane %v1911, 7
        %v1982 = vsel %vm899, %v1980, %v1981
        %v1983 = vrot.slane %v1912, 7
        %v1984 = vrot.slane %v1913, 7
        %v1985 = vsel %vm899, %v1983, %v1984
        %v1986 = vrot.slane %v1914, 7
        %v1987 = vrot.slane %v1915, 7
        %v1988 = vsel %vm899, %v1986, %v1987
        %v1989 = vrot.slane %v1916, 7
        %v1990 = vrot.slane %v1917, 7
        %v1991 = vsel %vm899, %v1989, %v1990
        %v1992 = vrot.slane %v1918, 7
        %v1993 = vrot.slane %v1919, 7
        %v1994 = vsel %vm899, %v1992, %v1993
        %v1995 = vrot.slane %v1920, 7
        %v1996 = vrot.slane %v1921, 7
        %v1997 = vsel %vm899, %v1995, %v1996
        %v1998 = vrot.slane %v1922, 7
        %v1999 = vrot.slane %v1923, 7
        %v2000 = vsel %vm899, %v1998, %v1999
        %v2001 = vrot.slane %v1924, 7
        %v2002 = vrot.slane %v1925, 7
        %v2003 = vsel %vm899, %v2001, %v2002
        %v2004 = vrot.slane %v1926, 7
        %v2005 = vrot.slane %v1927, 7
        %v2006 = vsel %vm899, %v2004, %v2005
        %v2007 = vrot.slane %v1928, 7
        %v2008 = vrot.slane %v1929, 7
        %v2009 = vsel %vm899, %v2007, %v2008
        %v2058 = vadd.f32 %v1849, %v1962
        %v2059 = vadd.f32 %v1850, %v1964
        %v2060 = vadd.f32 %v1851, %v1963
        %v2061 = vadd.f32 %v1852, %v1965
        %v2062 = vadd.f32 %v1853, %v1967
        %v2063 = vadd.f32 %v1854, %v1966
        %v2064 = vadd.f32 %v1855, %v1968
        %v2065 = vadd.f32 %v1856, %v1970
        %v2066 = vadd.f32 %v1857, %v1969
        %v2067 = vadd.f32 %v1858, %v1971
        %v2068 = vadd.f32 %v1859, %v1973
        %v2069 = vadd.f32 %v1860, %v1972
        %v2070 = vadd.f32 %v1861, %v1974
        %v2071 = vadd.f32 %v1862, %v1976
        %v2072 = vadd.f32 %v1863, %v1975
        %v2073 = vadd.f32 %v1864, %v1977
        %v2074 = vadd.f32 %v1865, %v1979
        %v2075 = vadd.f32 %v1866, %v1978
        %v2076 = vadd.f32 %v1867, %v1980
        %v2077 = vadd.f32 %v1868, %v1982
        %v2078 = vadd.f32 %v1869, %v1981
        %v2079 = vadd.f32 %v1870, %v1983
        %v2080 = vadd.f32 %v1871, %v1985
        %v2081 = vadd.f32 %v1872, %v1984
        %v2082 = vadd.f32 %v1873, %v1986
        %v2083 = vadd.f32 %v1874, %v1988
        %v2084 = vadd.f32 %v1875, %v1987
        %v2085 = vadd.f32 %v1876, %v1989
        %v2086 = vadd.f32 %v1877, %v1991
        %v2087 = vadd.f32 %v1878, %v1990
        %v2088 = vadd.f32 %v1879, %v1992
        %v2089 = vadd.f32 %v1880, %v1994
        %v2090 = vadd.f32 %v1881, %v1993
        %v2091 = vadd.f32 %v1882, %v1995
        %v2092 = vadd.f32 %v1883, %v1997
        %v2093 = vadd.f32 %v1884, %v1996
        %v2094 = vadd.f32 %v1885, %v1998
        %v2095 = vadd.f32 %v1886, %v2000
        %v2096 = vadd.f32 %v1887, %v1999
        %v2097 = vadd.f32 %v1888, %v2001
        %v2098 = vadd.f32 %v1889, %v2003
        %v2099 = vadd.f32 %v1890, %v2002
        %v2100 = vadd.f32 %v1891, %v2004
        %v2101 = vadd.f32 %v1892, %v2006
        %v2102 = vadd.f32 %v1893, %v2005
        %v2103 = vadd.f32 %v1894, %v2007
        %v2104 = vadd.f32 %v1895, %v2009
        %v2105 = vadd.f32 %v1896, %v2008
        %v2106 = vperm.slane %v783, 7
        %v2107 = vmul.f32 %v735, %v2106
        %v2108 = vmul.f32 %v736, %v2106
        %v2109 = vmul.f32 %v737, %v2106
        %v2110 = vmul.f32 %v738, %v2106
        %v2111 = vmul.f32 %v739, %v2106
        %v2112 = vmul.f32 %v740, %v2106
        %v2113 = vmul.f32 %v741, %v2106
        %v2114 = vmul.f32 %v742, %v2106
        %v2115 = vmul.f32 %v743, %v2106
        %v2116 = vmul.f32 %v744, %v2106
        %v2117 = vmul.f32 %v745, %v2106
        %v2118 = vmul.f32 %v746, %v2106
        %v2119 = vmul.f32 %v747, %v2106
        %v2120 = vmul.f32 %v748, %v2106
        %v2121 = vmul.f32 %v749, %v2106
        %v2122 = vmul.f32 %v750, %v2106
        %v2123 = vmul.f32 %v751, %v2106
        %v2124 = vmul.f32 %v752, %v2106
        %v2125 = vmul.f32 %v753, %v2106
        %v2126 = vmul.f32 %v754, %v2106
        %v2127 = vmul.f32 %v755, %v2106
        %v2128 = vmul.f32 %v756, %v2106
        %v2129 = vmul.f32 %v757, %v2106
        %v2130 = vmul.f32 %v758, %v2106
        %v2131 = vmul.f32 %v759, %v2106
        %v2132 = vmul.f32 %v760, %v2106
        %v2133 = vmul.f32 %v761, %v2106
        %v2134 = vmul.f32 %v762, %v2106
        %v2135 = vmul.f32 %v763, %v2106
        %v2136 = vmul.f32 %v764, %v2106
        %v2137 = vmul.f32 %v765, %v2106
        %v2138 = vmul.f32 %v766, %v2106
        %v2139 = vmul.f32 %v767, %v2106
        %v2140 = vmul.f32 %v768, %v2106
        %v2141 = vmul.f32 %v769, %v2106
        %v2142 = vmul.f32 %v770, %v2106
        %v2143 = vmul.f32 %v771, %v2106
        %v2144 = vmul.f32 %v772, %v2106
        %v2145 = vmul.f32 %v773, %v2106
        %v2146 = vmul.f32 %v774, %v2106
        %v2147 = vmul.f32 %v775, %v2106
        %v2148 = vmul.f32 %v776, %v2106
        %v2149 = vmul.f32 %v777, %v2106
        %v2150 = vmul.f32 %v778, %v2106
        %v2151 = vmul.f32 %v779, %v2106
        %v2152 = vmul.f32 %v780, %v2106
        %v2153 = vmul.f32 %v781, %v2106
        %v2154 = vmul.f32 %v782, %v2106
        %v2155 = vadd.f32 %v2058, %v2107
        %v2156 = vadd.f32 %v2059, %v2108
        %v2157 = vadd.f32 %v2060, %v2109
        %v2158 = vadd.f32 %v2061, %v2110
        %v2159 = vadd.f32 %v2062, %v2111
        %v2160 = vadd.f32 %v2063, %v2112
        %v2161 = vadd.f32 %v2064, %v2113
        %v2162 = vadd.f32 %v2065, %v2114
        %v2163 = vadd.f32 %v2066, %v2115
        %v2164 = vadd.f32 %v2067, %v2116
        %v2165 = vadd.f32 %v2068, %v2117
        %v2166 = vadd.f32 %v2069, %v2118
        %v2167 = vadd.f32 %v2070, %v2119
        %v2168 = vadd.f32 %v2071, %v2120
        %v2169 = vadd.f32 %v2072, %v2121
        %v2170 = vadd.f32 %v2073, %v2122
        %v2171 = vadd.f32 %v2074, %v2123
        %v2172 = vadd.f32 %v2075, %v2124
        %v2173 = vadd.f32 %v2076, %v2125
        %v2174 = vadd.f32 %v2077, %v2126
        %v2175 = vadd.f32 %v2078, %v2127
        %v2176 = vadd.f32 %v2079, %v2128
        %v2177 = vadd.f32 %v2080, %v2129
        %v2178 = vadd.f32 %v2081, %v2130
        %v2179 = vadd.f32 %v2082, %v2131
        %v2180 = vadd.f32 %v2083, %v2132
        %v2181 = vadd.f32 %v2084, %v2133
        %v2182 = vadd.f32 %v2085, %v2134
        %v2183 = vadd.f32 %v2086, %v2135
        %v2184 = vadd.f32 %v2087, %v2136
        %v2185 = vadd.f32 %v2088, %v2137
        %v2186 = vadd.f32 %v2089, %v2138
        %v2187 = vadd.f32 %v2090, %v2139
        %v2188 = vadd.f32 %v2091, %v2140
        %v2189 = vadd.f32 %v2092, %v2141
        %v2190 = vadd.f32 %v2093, %v2142
        %v2191 = vadd.f32 %v2094, %v2143
        %v2192 = vadd.f32 %v2095, %v2144
        %v2193 = vadd.f32 %v2096, %v2145
        %v2194 = vadd.f32 %v2097, %v2146
        %v2195 = vadd.f32 %v2098, %v2147
        %v2196 = vadd.f32 %v2099, %v2148
        %v2197 = vadd.f32 %v2100, %v2149
        %v2198 = vadd.f32 %v2101, %v2150
        %v2199 = vadd.f32 %v2102, %v2151
        %v2200 = vadd.f32 %v2103, %v2152
        %v2201 = vadd.f32 %v2104, %v2153
        %v2202 = vadd.f32 %v2105, %v2154
        %v2203 = vperm.slane %v784, 0
        %v2204 = vmul.f32 %v735, %v2203
        %v2205 = vmul.f32 %v736, %v2203
        %v2206 = vmul.f32 %v737, %v2203
        %v2207 = vmul.f32 %v738, %v2203
        %v2208 = vmul.f32 %v739, %v2203
        %v2209 = vmul.f32 %v740, %v2203
        %v2210 = vmul.f32 %v741, %v2203
        %v2211 = vmul.f32 %v742, %v2203
        %v2212 = vmul.f32 %v743, %v2203
        %v2213 = vmul.f32 %v744, %v2203
        %v2214 = vmul.f32 %v745, %v2203
        %v2215 = vmul.f32 %v746, %v2203
        %v2216 = vmul.f32 %v747, %v2203
        %v2217 = vmul.f32 %v748, %v2203
        %v2218 = vmul.f32 %v749, %v2203
        %v2219 = vmul.f32 %v750, %v2203
        %v2220 = vmul.f32 %v751, %v2203
        %v2221 = vmul.f32 %v752, %v2203
        %v2222 = vmul.f32 %v753, %v2203
        %v2223 = vmul.f32 %v754, %v2203
        %v2224 = vmul.f32 %v755, %v2203
        %v2225 = vmul.f32 %v756, %v2203
        %v2226 = vmul.f32 %v757, %v2203
        %v2227 = vmul.f32 %v758, %v2203
        %v2228 = vmul.f32 %v759, %v2203
        %v2229 = vmul.f32 %v760, %v2203
        %v2230 = vmul.f32 %v761, %v2203
        %v2231 = vmul.f32 %v762, %v2203
        %v2232 = vmul.f32 %v763, %v2203
        %v2233 = vmul.f32 %v764, %v2203
        %v2234 = vmul.f32 %v765, %v2203
        %v2235 = vmul.f32 %v766, %v2203
        %v2236 = vmul.f32 %v767, %v2203
        %v2237 = vmul.f32 %v768, %v2203
        %v2238 = vmul.f32 %v769, %v2203
        %v2239 = vmul.f32 %v770, %v2203
        %v2240 = vmul.f32 %v771, %v2203
        %v2241 = vmul.f32 %v772, %v2203
        %v2242 = vmul.f32 %v773, %v2203
        %v2243 = vmul.f32 %v774, %v2203
        %v2244 = vmul.f32 %v775, %v2203
        %v2245 = vmul.f32 %v776, %v2203
        %v2246 = vmul.f32 %v777, %v2203
        %v2247 = vmul.f32 %v778, %v2203
        %v2248 = vmul.f32 %v779, %v2203
        %v2249 = vmul.f32 %v780, %v2203
        %v2250 = vmul.f32 %v781, %v2203
        %v2251 = vmul.f32 %v782, %v2203
        %v2300 = vrot.slane %v2204, 1
        %v2301 = vrot.slane %v2205, 1
        %v2302 = vsel %vm1238, %v2300, %v2301
        %v2303 = vrot.slane %v2206, 1
        %v2304 = vsel %vm1238, %v2301, %v2303
        %v2305 = vrot.slane %v2207, 1
        %v2306 = vrot.slane %v2208, 1
        %v2307 = vsel %vm1238, %v2305, %v2306
        %v2308 = vrot.slane %v2209, 1
        %v2309 = vsel %vm1238, %v2306, %v2308
        %v2310 = vrot.slane %v2210, 1
        %v2311 = vrot.slane %v2211, 1
        %v2312 = vsel %vm1238, %v2310, %v2311
        %v2313 = vrot.slane %v2212, 1
        %v2314 = vsel %vm1238, %v2311, %v2313
        %v2315 = vrot.slane %v2213, 1
        %v2316 = vrot.slane %v2214, 1
        %v2317 = vsel %vm1238, %v2315, %v2316
        %v2318 = vrot.slane %v2215, 1
        %v2319 = vsel %vm1238, %v2316, %v2318
        %v2320 = vrot.slane %v2216, 1
        %v2321 = vrot.slane %v2217, 1
        %v2322 = vsel %vm1238, %v2320, %v2321
        %v2323 = vrot.slane %v2218, 1
        %v2324 = vsel %vm1238, %v2321, %v2323
        %v2325 = vrot.slane %v2219, 1
        %v2326 = vrot.slane %v2220, 1
        %v2327 = vsel %vm1238, %v2325, %v2326
        %v2328 = vrot.slane %v2221, 1
        %v2329 = vsel %vm1238, %v2326, %v2328
        %v2330 = vrot.slane %v2222, 1
        %v2331 = vrot.slane %v2223, 1
        %v2332 = vsel %vm1238, %v2330, %v2331
        %v2333 = vrot.slane %v2224, 1
        %v2334 = vsel %vm1238, %v2331, %v2333
        %v2335 = vrot.slane %v2225, 1
        %v2336 = vrot.slane %v2226, 1
        %v2337 = vsel %vm1238, %v2335, %v2336
        %v2338 = vrot.slane %v2227, 1
        %v2339 = vsel %vm1238, %v2336, %v2338
        %v2340 = vrot.slane %v2228, 1
        %v2341 = vrot.slane %v2229, 1
        %v2342 = vsel %vm1238, %v2340, %v2341
        %v2343 = vrot.slane %v2230, 1
        %v2344 = vsel %vm1238, %v2341, %v2343
        %v2345 = vrot.slane %v2231, 1
        %v2346 = vrot.slane %v2232, 1
        %v2347 = vsel %vm1238, %v2345, %v2346
        %v2348 = vrot.slane %v2233, 1
        %v2349 = vsel %vm1238, %v2346, %v2348
        %v2350 = vrot.slane %v2234, 1
        %v2351 = vrot.slane %v2235, 1
        %v2352 = vsel %vm1238, %v2350, %v2351
        %v2353 = vrot.slane %v2236, 1
        %v2354 = vsel %vm1238, %v2351, %v2353
        %v2355 = vrot.slane %v2237, 1
        %v2356 = vrot.slane %v2238, 1
        %v2357 = vsel %vm1238, %v2355, %v2356
        %v2358 = vrot.slane %v2239, 1
        %v2359 = vsel %vm1238, %v2356, %v2358
        %v2360 = vrot.slane %v2240, 1
        %v2361 = vrot.slane %v2241, 1
        %v2362 = vsel %vm1238, %v2360, %v2361
        %v2363 = vrot.slane %v2242, 1
        %v2364 = vsel %vm1238, %v2361, %v2363
        %v2365 = vrot.slane %v2243, 1
        %v2366 = vrot.slane %v2244, 1
        %v2367 = vsel %vm1238, %v2365, %v2366
        %v2368 = vrot.slane %v2245, 1
        %v2369 = vsel %vm1238, %v2366, %v2368
        %v2370 = vrot.slane %v2246, 1
        %v2371 = vrot.slane %v2247, 1
        %v2372 = vsel %vm1238, %v2370, %v2371
        %v2373 = vrot.slane %v2248, 1
        %v2374 = vsel %vm1238, %v2371, %v2373
        %v2375 = vrot.slane %v2249, 1
        %v2376 = vrot.slane %v2250, 1
        %v2377 = vsel %vm1238, %v2375, %v2376
        %v2378 = vrot.slane %v2251, 1
        %v2379 = vsel %vm1238, %v2376, %v2378
        %v2428 = vadd.f32 %v2155, %v2302
        %v2429 = vadd.f32 %v2156, %v2304
        %v2430 = vadd.f32 %v2157, %v2303
        %v2431 = vadd.f32 %v2158, %v2307
        %v2432 = vadd.f32 %v2159, %v2309
        %v2433 = vadd.f32 %v2160, %v2308
        %v2434 = vadd.f32 %v2161, %v2312
        %v2435 = vadd.f32 %v2162, %v2314
        %v2436 = vadd.f32 %v2163, %v2313
        %v2437 = vadd.f32 %v2164, %v2317
        %v2438 = vadd.f32 %v2165, %v2319
        %v2439 = vadd.f32 %v2166, %v2318
        %v2440 = vadd.f32 %v2167, %v2322
        %v2441 = vadd.f32 %v2168, %v2324
        %v2442 = vadd.f32 %v2169, %v2323
        %v2443 = vadd.f32 %v2170, %v2327
        %v2444 = vadd.f32 %v2171, %v2329
        %v2445 = vadd.f32 %v2172, %v2328
        %v2446 = vadd.f32 %v2173, %v2332
        %v2447 = vadd.f32 %v2174, %v2334
        %v2448 = vadd.f32 %v2175, %v2333
        %v2449 = vadd.f32 %v2176, %v2337
        %v2450 = vadd.f32 %v2177, %v2339
        %v2451 = vadd.f32 %v2178, %v2338
        %v2452 = vadd.f32 %v2179, %v2342
        %v2453 = vadd.f32 %v2180, %v2344
        %v2454 = vadd.f32 %v2181, %v2343
        %v2455 = vadd.f32 %v2182, %v2347
        %v2456 = vadd.f32 %v2183, %v2349
        %v2457 = vadd.f32 %v2184, %v2348
        %v2458 = vadd.f32 %v2185, %v2352
        %v2459 = vadd.f32 %v2186, %v2354
        %v2460 = vadd.f32 %v2187, %v2353
        %v2461 = vadd.f32 %v2188, %v2357
        %v2462 = vadd.f32 %v2189, %v2359
        %v2463 = vadd.f32 %v2190, %v2358
        %v2464 = vadd.f32 %v2191, %v2362
        %v2465 = vadd.f32 %v2192, %v2364
        %v2466 = vadd.f32 %v2193, %v2363
        %v2467 = vadd.f32 %v2194, %v2367
        %v2468 = vadd.f32 %v2195, %v2369
        %v2469 = vadd.f32 %v2196, %v2368
        %v2470 = vadd.f32 %v2197, %v2372
        %v2471 = vadd.f32 %v2198, %v2374
        %v2472 = vadd.f32 %v2199, %v2373
        %v2473 = vadd.f32 %v2200, %v2377
        %v2474 = vadd.f32 %v2201, %v2379
        %v2475 = vadd.f32 %v2202, %v2378
        %v2476 = vld [vmem:[%s4] sm:$0x1]
        %v2478 = vperm.slane %v2476, 0
        %v2480 = vadd.f32 %v2428, %v2478
        %v2481 = vadd.f32 %v2429, %v2478
        %v2482 = vadd.f32 %v2430, %v2478
        %v2483 = vadd.f32 %v2431, %v2478
        %v2484 = vadd.f32 %v2432, %v2478
        %v2485 = vadd.f32 %v2433, %v2478
        %v2486 = vadd.f32 %v2434, %v2478
        %v2487 = vadd.f32 %v2435, %v2478
        %v2488 = vadd.f32 %v2436, %v2478
        %v2489 = vadd.f32 %v2437, %v2478
        %v2490 = vadd.f32 %v2438, %v2478
        %v2491 = vadd.f32 %v2439, %v2478
        %v2492 = vadd.f32 %v2440, %v2478
        %v2493 = vadd.f32 %v2441, %v2478
        %v2494 = vadd.f32 %v2442, %v2478
        %v2495 = vadd.f32 %v2443, %v2478
        %v2496 = vadd.f32 %v2444, %v2478
        %v2497 = vadd.f32 %v2445, %v2478
        %v2498 = vadd.f32 %v2446, %v2478
        %v2499 = vadd.f32 %v2447, %v2478
        %v2500 = vadd.f32 %v2448, %v2478
        %v2501 = vadd.f32 %v2449, %v2478
        %v2502 = vadd.f32 %v2450, %v2478
        %v2503 = vadd.f32 %v2451, %v2478
        %v2504 = vadd.f32 %v2452, %v2478
        %v2505 = vadd.f32 %v2453, %v2478
        %v2506 = vadd.f32 %v2454, %v2478
        %v2507 = vadd.f32 %v2455, %v2478
        %v2508 = vadd.f32 %v2456, %v2478
        %v2509 = vadd.f32 %v2457, %v2478
        %v2510 = vadd.f32 %v2458, %v2478
        %v2511 = vadd.f32 %v2459, %v2478
        %v2512 = vadd.f32 %v2460, %v2478
        %v2513 = vadd.f32 %v2461, %v2478
        %v2514 = vadd.f32 %v2462, %v2478
        %v2515 = vadd.f32 %v2463, %v2478
        %v2516 = vadd.f32 %v2464, %v2478
        %v2517 = vadd.f32 %v2465, %v2478
        %v2518 = vadd.f32 %v2466, %v2478
        %v2519 = vadd.f32 %v2467, %v2478
        %v2520 = vadd.f32 %v2468, %v2478
        %v2521 = vadd.f32 %v2469, %v2478
        %v2522 = vadd.f32 %v2470, %v2478
        %v2523 = vadd.f32 %v2471, %v2478
        %v2524 = vadd.f32 %v2472, %v2478
        %v2525 = vadd.f32 %v2473, %v2478
        %v2526 = vadd.f32 %v2474, %v2478
        %v2527 = vadd.f32 %v2475, %v2478
        %v2528 = vadd.f32 %v2480, 3.0
        %v2529 = vadd.f32 %v2481, 3.0
        %v2530 = vadd.f32 %v2482, 3.0
        %v2531 = vadd.f32 %v2483, 3.0
        %v2532 = vadd.f32 %v2484, 3.0
        %v2533 = vadd.f32 %v2485, 3.0
        %v2534 = vadd.f32 %v2486, 3.0
        %v2535 = vadd.f32 %v2487, 3.0
        %v2536 = vadd.f32 %v2488, 3.0
        %v2537 = vadd.f32 %v2489, 3.0
        %v2538 = vadd.f32 %v2490, 3.0
        %v2539 = vadd.f32 %v2491, 3.0
        %v2540 = vadd.f32 %v2492, 3.0
        %v2541 = vadd.f32 %v2493, 3.0
        %v2542 = vadd.f32 %v2494, 3.0
        %v2543 = vadd.f32 %v2495, 3.0
        %v2544 = vadd.f32 %v2496, 3.0
        %v2545 = vadd.f32 %v2497, 3.0
        %v2546 = vadd.f32 %v2498, 3.0
        %v2547 = vadd.f32 %v2499, 3.0
        %v2548 = vadd.f32 %v2500, 3.0
        %v2549 = vadd.f32 %v2501, 3.0
        %v2550 = vadd.f32 %v2502, 3.0
        %v2551 = vadd.f32 %v2503, 3.0
        %v2552 = vadd.f32 %v2504, 3.0
        %v2553 = vadd.f32 %v2505, 3.0
        %v2554 = vadd.f32 %v2506, 3.0
        %v2555 = vadd.f32 %v2507, 3.0
        %v2556 = vadd.f32 %v2508, 3.0
        %v2557 = vadd.f32 %v2509, 3.0
        %v2558 = vadd.f32 %v2510, 3.0
        %v2559 = vadd.f32 %v2511, 3.0
        %v2560 = vadd.f32 %v2512, 3.0
        %v2561 = vadd.f32 %v2513, 3.0
        %v2562 = vadd.f32 %v2514, 3.0
        %v2563 = vadd.f32 %v2515, 3.0
        %v2564 = vadd.f32 %v2516, 3.0
        %v2565 = vadd.f32 %v2517, 3.0
        %v2566 = vadd.f32 %v2518, 3.0
        %v2567 = vadd.f32 %v2519, 3.0
        %v2568 = vadd.f32 %v2520, 3.0
        %v2569 = vadd.f32 %v2521, 3.0
        %v2570 = vadd.f32 %v2522, 3.0
        %v2571 = vadd.f32 %v2523, 3.0
        %v2572 = vadd.f32 %v2524, 3.0
        %v2573 = vadd.f32 %v2525, 3.0
        %v2574 = vadd.f32 %v2526, 3.0
        %v2575 = vadd.f32 %v2527, 3.0
        %v2576 = vmax.f32 %v2528, 0.0
        %v2577 = vmax.f32 %v2529, 0.0
        %v2578 = vmax.f32 %v2530, 0.0
        %v2579 = vmax.f32 %v2531, 0.0
        %v2580 = vmax.f32 %v2532, 0.0
        %v2581 = vmax.f32 %v2533, 0.0
        %v2582 = vmax.f32 %v2534, 0.0
        %v2583 = vmax.f32 %v2535, 0.0
        %v2584 = vmax.f32 %v2536, 0.0
        %v2585 = vmax.f32 %v2537, 0.0
        %v2586 = vmax.f32 %v2538, 0.0
        %v2587 = vmax.f32 %v2539, 0.0
        %v2588 = vmax.f32 %v2540, 0.0
        %v2589 = vmax.f32 %v2541, 0.0
        %v2590 = vmax.f32 %v2542, 0.0
        %v2591 = vmax.f32 %v2543, 0.0
        %v2592 = vmax.f32 %v2544, 0.0
        %v2593 = vmax.f32 %v2545, 0.0
        %v2594 = vmax.f32 %v2546, 0.0
        %v2595 = vmax.f32 %v2547, 0.0
        %v2596 = vmax.f32 %v2548, 0.0
        %v2597 = vmax.f32 %v2549, 0.0
        %v2598 = vmax.f32 %v2550, 0.0
        %v2599 = vmax.f32 %v2551, 0.0
        %v2600 = vmax.f32 %v2552, 0.0
        %v2601 = vmax.f32 %v2553, 0.0
        %v2602 = vmax.f32 %v2554, 0.0
        %v2603 = vmax.f32 %v2555, 0.0
        %v2604 = vmax.f32 %v2556, 0.0
        %v2605 = vmax.f32 %v2557, 0.0
        %v2606 = vmax.f32 %v2558, 0.0
        %v2607 = vmax.f32 %v2559, 0.0
        %v2608 = vmax.f32 %v2560, 0.0
        %v2609 = vmax.f32 %v2561, 0.0
        %v2610 = vmax.f32 %v2562, 0.0
        %v2611 = vmax.f32 %v2563, 0.0
        %v2612 = vmax.f32 %v2564, 0.0
        %v2613 = vmax.f32 %v2565, 0.0
        %v2614 = vmax.f32 %v2566, 0.0
        %v2615 = vmax.f32 %v2567, 0.0
        %v2616 = vmax.f32 %v2568, 0.0
        %v2617 = vmax.f32 %v2569, 0.0
        %v2618 = vmax.f32 %v2570, 0.0
        %v2619 = vmax.f32 %v2571, 0.0
        %v2620 = vmax.f32 %v2572, 0.0
        %v2621 = vmax.f32 %v2573, 0.0
        %v2622 = vmax.f32 %v2574, 0.0
        %v2623 = vmax.f32 %v2575, 0.0
        %v2624 = vmin.f32 %v2576, 6.0
        %v2625 = vmin.f32 %v2577, 6.0
        %v2626 = vmin.f32 %v2578, 6.0
        %v2627 = vmin.f32 %v2579, 6.0
        %v2628 = vmin.f32 %v2580, 6.0
        %v2629 = vmin.f32 %v2581, 6.0
        %v2630 = vmin.f32 %v2582, 6.0
        %v2631 = vmin.f32 %v2583, 6.0
        %v2632 = vmin.f32 %v2584, 6.0
        %v2633 = vmin.f32 %v2585, 6.0
        %v2634 = vmin.f32 %v2586, 6.0
        %v2635 = vmin.f32 %v2587, 6.0
        %v2636 = vmin.f32 %v2588, 6.0
        %v2637 = vmin.f32 %v2589, 6.0
        %v2638 = vmin.f32 %v2590, 6.0
        %v2639 = vmin.f32 %v2591, 6.0
        %v2640 = vmin.f32 %v2592, 6.0
        %v2641 = vmin.f32 %v2593, 6.0
        %v2642 = vmin.f32 %v2594, 6.0
        %v2643 = vmin.f32 %v2595, 6.0
        %v2644 = vmin.f32 %v2596, 6.0
        %v2645 = vmin.f32 %v2597, 6.0
        %v2646 = vmin.f32 %v2598, 6.0
        %v2647 = vmin.f32 %v2599, 6.0
        %v2648 = vmin.f32 %v2600, 6.0
        %v2649 = vmin.f32 %v2601, 6.0
        %v2650 = vmin.f32 %v2602, 6.0
        %v2651 = vmin.f32 %v2603, 6.0
        %v2652 = vmin.f32 %v2604, 6.0
        %v2653 = vmin.f32 %v2605, 6.0
        %v2654 = vmin.f32 %v2606, 6.0
        %v2655 = vmin.f32 %v2607, 6.0
        %v2656 = vmin.f32 %v2608, 6.0
        %v2657 = vmin.f32 %v2609, 6.0
        %v2658 = vmin.f32 %v2610, 6.0
        %v2659 = vmin.f32 %v2611, 6.0
        %v2660 = vmin.f32 %v2612, 6.0
        %v2661 = vmin.f32 %v2613, 6.0
        %v2662 = vmin.f32 %v2614, 6.0
        %v2663 = vmin.f32 %v2615, 6.0
        %v2664 = vmin.f32 %v2616, 6.0
        %v2665 = vmin.f32 %v2617, 6.0
        %v2666 = vmin.f32 %v2618, 6.0
        %v2667 = vmin.f32 %v2619, 6.0
        %v2668 = vmin.f32 %v2620, 6.0
        %v2669 = vmin.f32 %v2621, 6.0
        %v2670 = vmin.f32 %v2622, 6.0
        %v2671 = vmin.f32 %v2623, 6.0
        %v2672 = vmul.f32 %v2480, %v2624
        %v2673 = vmul.f32 %v2481, %v2625
        %v2674 = vmul.f32 %v2482, %v2626
        %v2675 = vmul.f32 %v2483, %v2627
        %v2676 = vmul.f32 %v2484, %v2628
        %v2677 = vmul.f32 %v2485, %v2629
        %v2678 = vmul.f32 %v2486, %v2630
        %v2679 = vmul.f32 %v2487, %v2631
        %v2680 = vmul.f32 %v2488, %v2632
        %v2681 = vmul.f32 %v2489, %v2633
        %v2682 = vmul.f32 %v2490, %v2634
        %v2683 = vmul.f32 %v2491, %v2635
        %v2684 = vmul.f32 %v2492, %v2636
        %v2685 = vmul.f32 %v2493, %v2637
        %v2686 = vmul.f32 %v2494, %v2638
        %v2687 = vmul.f32 %v2495, %v2639
        %v2688 = vmul.f32 %v2496, %v2640
        %v2689 = vmul.f32 %v2497, %v2641
        %v2690 = vmul.f32 %v2498, %v2642
        %v2691 = vmul.f32 %v2499, %v2643
        %v2692 = vmul.f32 %v2500, %v2644
        %v2693 = vmul.f32 %v2501, %v2645
        %v2694 = vmul.f32 %v2502, %v2646
        %v2695 = vmul.f32 %v2503, %v2647
        %v2696 = vmul.f32 %v2504, %v2648
        %v2697 = vmul.f32 %v2505, %v2649
        %v2698 = vmul.f32 %v2506, %v2650
        %v2699 = vmul.f32 %v2507, %v2651
        %v2700 = vmul.f32 %v2508, %v2652
        %v2701 = vmul.f32 %v2509, %v2653
        %v2702 = vmul.f32 %v2510, %v2654
        %v2703 = vmul.f32 %v2511, %v2655
        %v2704 = vmul.f32 %v2512, %v2656
        %v2705 = vmul.f32 %v2513, %v2657
        %v2706 = vmul.f32 %v2514, %v2658
        %v2707 = vmul.f32 %v2515, %v2659
        %v2708 = vmul.f32 %v2516, %v2660
        %v2709 = vmul.f32 %v2517, %v2661
        %v2710 = vmul.f32 %v2518, %v2662
        %v2711 = vmul.f32 %v2519, %v2663
        %v2712 = vmul.f32 %v2520, %v2664
        %v2713 = vmul.f32 %v2521, %v2665
        %v2714 = vmul.f32 %v2522, %v2666
        %v2715 = vmul.f32 %v2523, %v2667
        %v2716 = vmul.f32 %v2524, %v2668
        %v2717 = vmul.f32 %v2525, %v2669
        %v2718 = vmul.f32 %v2526, %v2670
        %v2719 = vmul.f32 %v2527, %v2671
        %v2720 = vmul.f32 %v2672, 0.16666667
        %v2721 = vmul.f32 %v2673, 0.16666667
        %v2722 = vmul.f32 %v2674, 0.16666667
        %v2723 = vmul.f32 %v2675, 0.16666667
        %v2724 = vmul.f32 %v2676, 0.16666667
        %v2725 = vmul.f32 %v2677, 0.16666667
        %v2726 = vmul.f32 %v2678, 0.16666667
        %v2727 = vmul.f32 %v2679, 0.16666667
        %v2728 = vmul.f32 %v2680, 0.16666667
        %v2729 = vmul.f32 %v2681, 0.16666667
        %v2730 = vmul.f32 %v2682, 0.16666667
        %v2731 = vmul.f32 %v2683, 0.16666667
        %v2732 = vmul.f32 %v2684, 0.16666667
        %v2733 = vmul.f32 %v2685, 0.16666667
        %v2734 = vmul.f32 %v2686, 0.16666667
        %v2735 = vmul.f32 %v2687, 0.16666667
        %v2736 = vmul.f32 %v2688, 0.16666667
        %v2737 = vmul.f32 %v2689, 0.16666667
        %v2738 = vmul.f32 %v2690, 0.16666667
        %v2739 = vmul.f32 %v2691, 0.16666667
        %v2740 = vmul.f32 %v2692, 0.16666667
        %v2741 = vmul.f32 %v2693, 0.16666667
        %v2742 = vmul.f32 %v2694, 0.16666667
        %v2743 = vmul.f32 %v2695, 0.16666667
        %v2744 = vmul.f32 %v2696, 0.16666667
        %v2745 = vmul.f32 %v2697, 0.16666667
        %v2746 = vmul.f32 %v2698, 0.16666667
        %v2747 = vmul.f32 %v2699, 0.16666667
        %v2748 = vmul.f32 %v2700, 0.16666667
        %v2749 = vmul.f32 %v2701, 0.16666667
        %v2750 = vmul.f32 %v2702, 0.16666667
        %v2751 = vmul.f32 %v2703, 0.16666667
        %v2752 = vmul.f32 %v2704, 0.16666667
        %v2753 = vmul.f32 %v2705, 0.16666667
        %v2754 = vmul.f32 %v2706, 0.16666667
        %v2755 = vmul.f32 %v2707, 0.16666667
        %v2756 = vmul.f32 %v2708, 0.16666667
        %v2757 = vmul.f32 %v2709, 0.16666667
        %v2758 = vmul.f32 %v2710, 0.16666667
        %v2759 = vmul.f32 %v2711, 0.16666667
        %v2760 = vmul.f32 %v2712, 0.16666667
        %v2761 = vmul.f32 %v2713, 0.16666667
        %v2762 = vmul.f32 %v2714, 0.16666667
        %v2763 = vmul.f32 %v2715, 0.16666667
        %v2764 = vmul.f32 %v2716, 0.16666667
        %v2765 = vmul.f32 %v2717, 0.16666667
        %v2766 = vmul.f32 %v2718, 0.16666667
        %v2767 = vmul.f32 %v2719, 0.16666667
        %v2816 = vrot.slane %v2720, 1
        %v2817 = vrot.slane %v2721, 1
        %v2818 = vsel %vm1238, %v2816, %v2817
        %v2819 = vrot.slane %v2722, 1
        %v2820 = vsel %vm1238, %v2817, %v2819
        %v2821 = vrot.slane %v2723, 1
        %v2822 = vrot.slane %v2724, 1
        %v2823 = vsel %vm1238, %v2821, %v2822
        %v2824 = vrot.slane %v2725, 1
        %v2825 = vsel %vm1238, %v2822, %v2824
        %v2826 = vrot.slane %v2726, 1
        %v2827 = vrot.slane %v2727, 1
        %v2828 = vsel %vm1238, %v2826, %v2827
        %v2829 = vrot.slane %v2728, 1
        %v2830 = vsel %vm1238, %v2827, %v2829
        %v2831 = vrot.slane %v2729, 1
        %v2832 = vrot.slane %v2730, 1
        %v2833 = vsel %vm1238, %v2831, %v2832
        %v2834 = vrot.slane %v2731, 1
        %v2835 = vsel %vm1238, %v2832, %v2834
        %v2836 = vrot.slane %v2732, 1
        %v2837 = vrot.slane %v2733, 1
        %v2838 = vsel %vm1238, %v2836, %v2837
        %v2839 = vrot.slane %v2734, 1
        %v2840 = vsel %vm1238, %v2837, %v2839
        %v2841 = vrot.slane %v2735, 1
        %v2842 = vrot.slane %v2736, 1
        %v2843 = vsel %vm1238, %v2841, %v2842
        %v2844 = vrot.slane %v2737, 1
        %v2845 = vsel %vm1238, %v2842, %v2844
        %v2846 = vrot.slane %v2738, 1
        %v2847 = vrot.slane %v2739, 1
        %v2848 = vsel %vm1238, %v2846, %v2847
        %v2849 = vrot.slane %v2740, 1
        %v2850 = vsel %vm1238, %v2847, %v2849
        %v2851 = vrot.slane %v2741, 1
        %v2852 = vrot.slane %v2742, 1
        %v2853 = vsel %vm1238, %v2851, %v2852
        %v2854 = vrot.slane %v2743, 1
        %v2855 = vsel %vm1238, %v2852, %v2854
        %v2856 = vrot.slane %v2744, 1
        %v2857 = vrot.slane %v2745, 1
        %v2858 = vsel %vm1238, %v2856, %v2857
        %v2859 = vrot.slane %v2746, 1
        %v2860 = vsel %vm1238, %v2857, %v2859
        %v2861 = vrot.slane %v2747, 1
        %v2862 = vrot.slane %v2748, 1
        %v2863 = vsel %vm1238, %v2861, %v2862
        %v2864 = vrot.slane %v2749, 1
        %v2865 = vsel %vm1238, %v2862, %v2864
        %v2866 = vrot.slane %v2750, 1
        %v2867 = vrot.slane %v2751, 1
        %v2868 = vsel %vm1238, %v2866, %v2867
        %v2869 = vrot.slane %v2752, 1
        %v2870 = vsel %vm1238, %v2867, %v2869
        %v2871 = vrot.slane %v2753, 1
        %v2872 = vrot.slane %v2754, 1
        %v2873 = vsel %vm1238, %v2871, %v2872
        %v2874 = vrot.slane %v2755, 1
        %v2875 = vsel %vm1238, %v2872, %v2874
        %v2876 = vrot.slane %v2756, 1
        %v2877 = vrot.slane %v2757, 1
        %v2878 = vsel %vm1238, %v2876, %v2877
        %v2879 = vrot.slane %v2758, 1
        %v2880 = vsel %vm1238, %v2877, %v2879
        %v2881 = vrot.slane %v2759, 1
        %v2882 = vrot.slane %v2760, 1
        %v2883 = vsel %vm1238, %v2881, %v2882
        %v2884 = vrot.slane %v2761, 1
        %v2885 = vsel %vm1238, %v2882, %v2884
        %v2886 = vrot.slane %v2762, 1
        %v2887 = vrot.slane %v2763, 1
        %v2888 = vsel %vm1238, %v2886, %v2887
        %v2889 = vrot.slane %v2764, 1
        %v2890 = vsel %vm1238, %v2887, %v2889
        %v2891 = vrot.slane %v2765, 1
        %v2892 = vrot.slane %v2766, 1
        %v2893 = vsel %vm1238, %v2891, %v2892
        %v2894 = vrot.slane %v2767, 1
        %v2895 = vsel %vm1238, %v2892, %v2894
        %v2928 = vpack.c.bf16 %v2820, %v2818
        %v2929 = vpack.c.bf16 %v2825, %v2823
        %v2930 = vpack.c.bf16 %v2830, %v2828
        %v2931 = vpack.c.bf16 %v2835, %v2833
        %v2932 = vpack.c.bf16 %v2840, %v2838
        %v2933 = vpack.c.bf16 %v2845, %v2843
        %v2934 = vpack.c.bf16 %v2850, %v2848
        %v2935 = vpack.c.bf16 %v2855, %v2853
        %v2936 = vpack.c.bf16 %v2860, %v2858
        %v2937 = vpack.c.bf16 %v2865, %v2863
        %v2938 = vpack.c.bf16 %v2870, %v2868
        %v2939 = vpack.c.bf16 %v2875, %v2873
        %v2940 = vpack.c.bf16 %v2880, %v2878
        %v2941 = vpack.c.bf16 %v2885, %v2883
        %v2942 = vpack.c.bf16 %v2890, %v2888
        %v2943 = vpack.c.bf16 %v2895, %v2893
        %v2944 = vld [vmem:[%s5] sm:$0xf]
        %v2945 = vld [vmem:[%s5 + $0x4] sm:$0xf]
        %v2946 = vld [vmem:[%s5 + $0x8] sm:$0xf]
        %v2947 = vld [vmem:[%s5 + $0xc] sm:$0xf]
        %v2948 = vld [vmem:[%s5 + $0x10] sm:$0xf]
        %v2949 = vld [vmem:[%s5 + $0x14] sm:$0xf]
        %v2950 = vld [vmem:[%s5 + $0x18] sm:$0xf]
        %v2951 = vld [vmem:[%s5 + $0x1c] sm:$0xf]
        %v2952 = vld [vmem:[%s5 + $0x20] sm:$0xf]
        %v2953 = vld [vmem:[%s5 + $0x24] sm:$0xf]
        %v2954 = vld [vmem:[%s5 + $0x28] sm:$0xf]
        %v2955 = vld [vmem:[%s5 + $0x2c] sm:$0xf]
        %v2956 = vld [vmem:[%s5 + $0x30] sm:$0xf]
        %v2957 = vld [vmem:[%s5 + $0x34] sm:$0xf]
        %v2958 = vld [vmem:[%s5 + $0x38] sm:$0xf]
        %v2959 = vld [vmem:[%s5 + $0x3c] sm:$0xf]
        %v2960 = vld [vmem:[%s6] sm:$0x1]
        %v2962 = vperm.slane %v2960, 0
        %v2980 = vunpack.c.l.b16 %v2944
        %v2981 = vunpack.c.l.b16 %v2945
        %v2982 = vunpack.c.l.b16 %v2946
        %v2983 = vunpack.c.l.b16 %v2947
        %v2984 = vunpack.c.l.b16 %v2948
        %v2985 = vunpack.c.l.b16 %v2949
        %v2986 = vunpack.c.l.b16 %v2950
        %v2987 = vunpack.c.l.b16 %v2951
        %v2988 = vunpack.c.l.b16 %v2952
        %v2989 = vunpack.c.l.b16 %v2953
        %v2990 = vunpack.c.l.b16 %v2954
        %v2991 = vunpack.c.l.b16 %v2955
        %v2992 = vunpack.c.l.b16 %v2956
        %v2993 = vunpack.c.l.b16 %v2957
        %v2994 = vunpack.c.l.b16 %v2958
        %v2995 = vunpack.c.l.b16 %v2959
        %v2996 = vpack.c.b16 %v2981, %v2980
        %v2997 = vpack.c.b16 %v2983, %v2982
        %v2998 = vpack.c.b16 %v2985, %v2984
        %v2999 = vpack.c.b16 %v2987, %v2986
        %v3000 = vpack.c.b16 %v2989, %v2988
        %v3001 = vpack.c.b16 %v2991, %v2990
        %v3002 = vpack.c.b16 %v2993, %v2992
        %v3003 = vpack.c.b16 %v2995, %v2994
        %3012 = vmatpush.bf16.msra.mxu0 %v3003
        %3013 = vmatpush.bf16.msra.mxu0 %v3002
        %3014 = vmatpush.bf16.msra.mxu0 %v3001
        %3015 = vmatpush.bf16.msra.mxu0 %v3000
        %3016 = vmatpush.bf16.msra.mxu0 %v2999
        %3017 = vmatpush.bf16.msra.mxu0 %v2998
        %3018 = vmatpush.bf16.msra.mxu0 %v2997
        %3019 = vmatpush.bf16.msra.mxu0 %v2996
        %3020 = vmatmul.bf16.gmra.mxu0 %v2928
        %v3021 = vpop.f32.mrf.mxu0
        %v3022 = vadd.f32 %v2962, %v3021
        %v3023 = vpop.f32.mrf.mxu0
        %v3024 = vadd.f32 %v2962, %v3023
        %3025 = vmatmul.bf16.gmra.mxu0 %v2929
        %v3026 = vpop.f32.mrf.mxu0
        %v3027 = vadd.f32 %v2962, %v3026
        %v3028 = vpop.f32.mrf.mxu0
        %v3029 = vadd.f32 %v2962, %v3028
        %3030 = vmatmul.bf16.gmra.mxu0 %v2930
        %v3031 = vpop.f32.mrf.mxu0
        %v3032 = vadd.f32 %v2962, %v3031
        %v3033 = vpop.f32.mrf.mxu0
        %v3034 = vadd.f32 %v2962, %v3033
        %3035 = vmatmul.bf16.gmra.mxu0 %v2931
        %v3036 = vpop.f32.mrf.mxu0
        %v3037 = vadd.f32 %v2962, %v3036
        %v3038 = vpop.f32.mrf.mxu0
        %v3039 = vadd.f32 %v2962, %v3038
        %3040 = vmatmul.bf16.gmra.mxu0 %v2932
        %v3041 = vpop.f32.mrf.mxu0
        %v3042 = vadd.f32 %v2962, %v3041
        %v3043 = vpop.f32.mrf.mxu0
        %v3044 = vadd.f32 %v2962, %v3043
        %3045 = vmatmul.bf16.gmra.mxu0 %v2933
        %v3046 = vpop.f32.mrf.mxu0
        %v3047 = vadd.f32 %v2962, %v3046
        %v3048 = vpop.f32.mrf.mxu0
        %v3049 = vadd.f32 %v2962, %v3048
        %3050 = vmatmul.bf16.gmra.mxu0 %v2934
        %v3051 = vpop.f32.mrf.mxu0
        %v3052 = vadd.f32 %v2962, %v3051
        %v3053 = vpop.f32.mrf.mxu0
        %v3054 = vadd.f32 %v2962, %v3053
        %3055 = vmatmul.bf16.gmra.mxu0 %v2935
        %v3056 = vpop.f32.mrf.mxu0
        %v3057 = vadd.f32 %v2962, %v3056
        %v3058 = vpop.f32.mrf.mxu0
        %v3059 = vadd.f32 %v2962, %v3058
        %3060 = vmatmul.bf16.gmra.mxu0 %v2936
        %v3061 = vpop.f32.mrf.mxu0
        %v3062 = vadd.f32 %v2962, %v3061
        %v3063 = vpop.f32.mrf.mxu0
        %v3064 = vadd.f32 %v2962, %v3063
        %3065 = vmatmul.bf16.gmra.mxu0 %v2937
        %v3066 = vpop.f32.mrf.mxu0
        %v3067 = vadd.f32 %v2962, %v3066
        %v3068 = vpop.f32.mrf.mxu0
        %v3069 = vadd.f32 %v2962, %v3068
        %3070 = vmatmul.bf16.gmra.mxu0 %v2938
        %v3071 = vpop.f32.mrf.mxu0
        %v3072 = vadd.f32 %v2962, %v3071
        %v3073 = vpop.f32.mrf.mxu0
        %v3074 = vadd.f32 %v2962, %v3073
        %3075 = vmatmul.bf16.gmra.mxu0 %v2939
        %v3076 = vpop.f32.mrf.mxu0
        %v3077 = vadd.f32 %v2962, %v3076
        %v3078 = vpop.f32.mrf.mxu0
        %v3079 = vadd.f32 %v2962, %v3078
        %3080 = vmatmul.bf16.gmra.mxu0 %v2940
        %v3081 = vpop.f32.mrf.mxu0
        %v3082 = vadd.f32 %v2962, %v3081
        %v3083 = vpop.f32.mrf.mxu0
        %v3084 = vadd.f32 %v2962, %v3083
        %3085 = vmatmul.bf16.gmra.mxu0 %v2941
        %v3086 = vpop.f32.mrf.mxu0
        %v3087 = vadd.f32 %v2962, %v3086
        %v3088 = vpop.f32.mrf.mxu0
        %v3089 = vadd.f32 %v2962, %v3088
        %3090 = vmatmul.bf16.gmra.mxu0 %v2942
        %v3091 = vpop.f32.mrf.mxu0
        %v3092 = vadd.f32 %v2962, %v3091
        %v3093 = vpop.f32.mrf.mxu0
        %v3094 = vadd.f32 %v2962, %v3093
        %3095 = vmatmul.bf16.gmra.mxu0 %v2943
        %v3096 = vpop.f32.mrf.mxu0
        %v3097 = vadd.f32 %v2962, %v3096
        %v3098 = vpop.f32.mrf.mxu0
        %v3099 = vadd.f32 %v2962, %v3098
        %3100 = vdwg.mxu0
        %v3101 = vadd.f32 %v277, %v3022
        %v3102 = vadd.f32 %v278, %v3024
        %v3103 = vadd.f32 %v279, %v3027
        %v3104 = vadd.f32 %v280, %v3029
        %v3105 = vadd.f32 %v281, %v3032
        %v3106 = vadd.f32 %v282, %v3034
        %v3107 = vadd.f32 %v283, %v3037
        %v3108 = vadd.f32 %v284, %v3039
        %v3109 = vadd.f32 %v285, %v3042
        %v3110 = vadd.f32 %v286, %v3044
        %v3111 = vadd.f32 %v287, %v3047
        %v3112 = vadd.f32 %v288, %v3049
        %v3113 = vadd.f32 %v289, %v3052
        %v3114 = vadd.f32 %v290, %v3054
        %v3115 = vadd.f32 %v291, %v3057
        %v3116 = vadd.f32 %v292, %v3059
        %v3117 = vadd.f32 %v293, %v3062
        %v3118 = vadd.f32 %v294, %v3064
        %v3119 = vadd.f32 %v295, %v3067
        %v3120 = vadd.f32 %v296, %v3069
        %v3121 = vadd.f32 %v297, %v3072
        %v3122 = vadd.f32 %v298, %v3074
        %v3123 = vadd.f32 %v299, %v3077
        %v3124 = vadd.f32 %v300, %v3079
        %v3125 = vadd.f32 %v301, %v3082
        %v3126 = vadd.f32 %v302, %v3084
        %v3127 = vadd.f32 %v303, %v3087
        %v3128 = vadd.f32 %v304, %v3089
        %v3129 = vadd.f32 %v305, %v3092
        %v3130 = vadd.f32 %v306, %v3094
        %v3131 = vadd.f32 %v307, %v3097
        %v3132 = vadd.f32 %v308, %v3099
        %3133 = vst [vmem:[%s271] sm:$0xff] %v3101
        %3134 = vst [vmem:[%s271 + $0x8] sm:$0xff] %v3102
        %3135 = vst [vmem:[%s271 + $0x10] sm:$0xff] %v3103
        %3136 = vst [vmem:[%s271 + $0x18] sm:$0xff] %v3104
        %3137 = vst [vmem:[%s271 + $0x20] sm:$0xff] %v3105
        %3138 = vst [vmem:[%s271 + $0x28] sm:$0xff] %v3106
        %3139 = vst [vmem:[%s271 + $0x30] sm:$0xff] %v3107
        %3140 = vst [vmem:[%s271 + $0x38] sm:$0xff] %v3108
        %3141 = vst [vmem:[%s271 + $0x40] sm:$0xff] %v3109
        %3142 = vst [vmem:[%s271 + $0x48] sm:$0xff] %v3110
        %3143 = vst [vmem:[%s271 + $0x50] sm:$0xff] %v3111
        %3144 = vst [vmem:[%s271 + $0x58] sm:$0xff] %v3112
        %3145 = vst [vmem:[%s271 + $0x60] sm:$0xff] %v3113
        %3146 = vst [vmem:[%s271 + $0x68] sm:$0xff] %v3114
        %3147 = vst [vmem:[%s271 + $0x70] sm:$0xff] %v3115
        %3148 = vst [vmem:[%s271 + $0x78] sm:$0xff] %v3116
        %3149 = vst [vmem:[%s271 + $0x80] sm:$0xff] %v3117
        %3150 = vst [vmem:[%s271 + $0x88] sm:$0xff] %v3118
        %3151 = vst [vmem:[%s271 + $0x90] sm:$0xff] %v3119
        %3152 = vst [vmem:[%s271 + $0x98] sm:$0xff] %v3120
        %3153 = vst [vmem:[%s271 + $0xa0] sm:$0xff] %v3121
        %3154 = vst [vmem:[%s271 + $0xa8] sm:$0xff] %v3122
        %3155 = vst [vmem:[%s271 + $0xb0] sm:$0xff] %v3123
        %3156 = vst [vmem:[%s271 + $0xb8] sm:$0xff] %v3124
        %3157 = vst [vmem:[%s271 + $0xc0] sm:$0xff] %v3125
        %3158 = vst [vmem:[%s271 + $0xc8] sm:$0xff] %v3126
        %3159 = vst [vmem:[%s271 + $0xd0] sm:$0xff] %v3127
        %3160 = vst [vmem:[%s271 + $0xd8] sm:$0xff] %v3128
        %3161 = vst [vmem:[%s271 + $0xe0] sm:$0xff] %v3129
        %3162 = vst [vmem:[%s271 + $0xe8] sm:$0xff] %v3130
        %3163 = vst [vmem:[%s271 + $0xf0] sm:$0xff] %v3131
        %3164 = vst [vmem:[%s271 + $0xf8] sm:$0xff] %v3132
        %s3165 = sand.u32 %s181, 1
        %s3166 = scalar_lea.sflag [#allocation4], %s3165
        %s3167 = sand.u32 %s181, 1
        %s3168 = smul.addr %s3167, 256
        %s3169 = scalar_lea.vmem [#allocation3], %s3168
        // Predicated region
        $region49: #{res_block_forward.1} parent=47 // pred_check
          %p3170 = pneg %p191
        $region50: #{res_block_forward.1} parent=47 // pred_check_branch
          %3172 = sbr.rel (%p3170) target = $region52
        $region51: #{res_block_forward.1} parent=47 // pred_region
          %3174 = vsyncadd %s3166, 0
          %s3175 = smul.addr %s21, 32
          %s3176 = smul.addr %s3175, 8
          %s3177 = scalar_lea.hbm %s7, %s3176
          %s3178 = sshll.u32 %s3169, 4
          %s3179 = int_to_ptr.vmem [resolvable:$true] %s3178
          %s3180 = sshll.u32 %s3177, 4
          %s3181 = int_to_ptr.hbm [resolvable:$true] %s3180
          %3186 = dma.vmem_to_hbm [thread:$0]  %s3179, 4096, %s3181, %s3166, 128, 128, 8
        $region52: #{res_block_forward.1} parent=47 // pred_fallthru
          _
      $region48: #{res_block_forward.1} parent=5 // pred_fallthru
        _
      %p3187 = scmp.le.s32.totalorder 2, %s16
      // Predicated region
      $region53: #{res_block_forward.1} parent=5 // pred_check
        %p3188 = pneg %p3187
      $region54: #{res_block_forward.1} parent=5 // pred_check_branch
        %3190 = sbr.rel (%p3188) target = $region56
      $region55: #{res_block_forward.1} parent=5 // pred_region
        %s3191 = ssub.s32 %s16, 2
        // Predicated region
        $region57: #{res_block_forward.1} parent=55 // pred_check
          %p3192 = pneg %p197
        $region58: #{res_block_forward.1} parent=55 // pred_check_branch
          %3194 = sbr.rel (%p3192) target = $region60
        $region59: #{res_block_forward.1} parent=55 // pred_region
          %s3195 = sand.u32 %s182, 1
          %s3196 = scalar_lea.sflag [#allocation4], %s3195
          %s3197 = sand.u32 %s182, 1
          %s3198 = smul.addr %s3197, 256
          %s3199 = scalar_lea.vmem [#allocation3], %s3198
          %3201 = dma.done %s3196, 4096
        $region60: #{res_block_forward.1} parent=55 // pred_fallthru
          _
      $region56: #{res_block_forward.1} parent=5 // pred_fallthru
        _
    $region6: #{res_block_forward.1} parent=1 // loop_footer
      %s20 = sadd.s32 1, %s16
    $region7: #{res_block_forward.1} parent=1 // loop_footer_branch
      %15 = sbr.rel target = $region3
    $region8: #{res_block_forward.1} parent=1 // loop_exit
      _
    %3202 = vsyncpa [#allocation4], 1
    %s3203 = scalar_lea.sflag [#allocation4], 1
    %3204 = vsyncpa %s3203, 1

</llo_original>
